<compile_context>
chip_gen: v6e
topology: v6e:2x2x1
jax: 0.10.0
libtpu: 0.0.40
codegen_flags: <defaults>
</compile_context>

<pallas_src>
from functools import partial

import jax
import jax.numpy as jnp
from jax.experimental import pallas as pl
from jax.experimental.pallas import tpu as pltpu


def _resblock_kernel(x_ref, m1_ref, b1_ref, m2_ref, b2_ref, o_ref, *, H, W, NC):
    # x_ref : VMEM (R, H*W) f32   batch folded into sublanes (rows >= NC are zero)
    # m*_ref: VMEM (R, 9*R) f32   block-diagonal im2col weight matrix
    # b*_ref: VMEM (R, 1)   f32   per-row bias (zero on pad rows)
    # o_ref : VMEM (NC, H*W) f32
    R, HW = x_ref.shape
    x = x_ref[...]                                          # (R, HW)

    # Per-pixel (h, w) coordinates (identical for every row) for border masking.
    pos = jax.lax.broadcasted_iota(jnp.int32, (R, HW), 1)
    if (W & (W - 1)) == 0:                                  # strength-reduced div/mod
        row = pos >> (W.bit_length() - 1)
        col = pos & (W - 1)
    else:
        row = pos // W
        col = pos % W

    def tap_mask(dy, dx):
        m = None
        if dy == -1:
            m = row >= 1                                    # needs h-1 >= 0
        elif dy == 1:
            m = row < (H - 1)                               # needs h+1 <  H
        if dx == -1:
            c = col >= 1
            m = c if m is None else (m & c)
        elif dx == 1:
            c = col < (W - 1)
            m = c if m is None else (m & c)
        return m                                            # None => center tap

    taps = [(ky - 1, kx - 1) for ky in range(3) for kx in range(3)]
    masks = [tap_mask(dy, dx) for (dy, dx) in taps]         # hoisted, shared by both convs

    def conv3x3_bias_relu(inp, m_ref, b_ref):
        # im2col: rows [t*R, (t+1)*R) of `patches` hold the image shifted by tap t
        # (zero outside the image); the conv is then a single MXU matmul.
        blocks = []
        for (dy, dx), mask in zip(taps, masks):
            s = dy * W + dx
            shifted = inp if s == 0 else pltpu.roll(inp, (-s) % HW, 1)
            if mask is not None:
                shifted = jnp.where(mask, shifted, 0.0)
            blocks.append(shifted)
        patches = jnp.concatenate(blocks, axis=0)           # (9*R, HW), 8-row aligned
        out = jnp.dot(m_ref[...], patches,                  # (R, HW) on the MXU
                      preferred_element_type=jnp.float32,
                      precision=jax.lax.Precision.HIGHEST)
        return jnp.maximum(out + b_ref[...], 0.0)           # bias + ReLU (pad rows stay 0)

    h1 = conv3x3_bias_relu(x, m1_ref, b1_ref)               # relu(conv1(x))
    h2 = conv3x3_bias_relu(h1, m2_ref, b2_ref)              # relu(conv2(h1))
    o_ref[...] = h2[:NC, :] + x[:NC, :]                     # residual add, drop pad rows


def simple_residual_block(x_nchw, w1, b1, w2, b2):
    """x_nchw: (N,C,H,W) f32; w*: (Cout,Cin,3,3) torch OIHW; b*: (Cout,)."""
    N, C, H, W = x_nchw.shape
    HW = H * W
    NC = N * C
    R = ((NC + 7) // 8) * 8                                 # pad rows to a sublane multiple

    x_flat = jnp.pad(x_nchw.reshape(NC, HW).astype(jnp.float32),
                     ((0, R - NC), (0, 0)))

    def weight_matrix(w):
        # (co, ci, ky, kx) -> block-diagonal-over-batch (R, 9*R) matrix with
        # M[n*C+co, t*R + n*C+ci] = w[co, ci, ky, kx], where t = ky*3 + kx.
        wt = w.reshape(C, C, 9).astype(jnp.float32)                     # (co, ci, t)
        m = jnp.einsum('oit,nm->tnomi', wt, jnp.eye(N, dtype=jnp.float32))
        m = m.reshape(9, NC, NC)
        m = jnp.pad(m, ((0, 0), (0, R - NC), (0, R - NC)))              # (9, R, R)
        return jnp.transpose(m, (1, 0, 2)).reshape(R, 9 * R)

    def bias_column(b):
        return jnp.pad(jnp.tile(b.astype(jnp.float32), N), (0, R - NC)).reshape(R, 1)

    kernel = partial(_resblock_kernel, H=H, W=W, NC=NC)

    # Single fused block, single invocation: whole arrays go to VMEM (default specs).
    # TODO(synk): if H*W ever scales to tens of MB, split H into row-blocks with a
    # 1-row halo instead of a whole-image block (v7x VMEM is 64 MiB).
    out_flat = pl.pallas_call(
        kernel,
        out_shape=jax.ShapeDtypeStruct((NC, HW), jnp.float32),
    )(x_flat, weight_matrix(w1), bias_column(b1), weight_matrix(w2), bias_column(b2))

    return out_flat.reshape(N, C, H, W)


def _reference(x, w1, b1, w2, b2):
    """Pure-JAX reference matching the PyTorch forward (NCHW / OIHW)."""
    dn = jax.lax.conv_dimension_numbers(x.shape, w1.shape,
                                        ('NCHW', 'OIHW', 'NCHW'))
    h = jax.lax.conv_general_dilated(x, w1, (1, 1), ((1, 1), (1, 1)),
                                     dimension_numbers=dn,
                                     precision=jax.lax.Precision.HIGHEST)
    h = jnp.maximum(h + b1[None, :, None, None], 0.0)
    h = jax.lax.conv_general_dilated(h, w2, (1, 1), ((1, 1), (1, 1)),
                                     dimension_numbers=dn,
                                     precision=jax.lax.Precision.HIGHEST)
    return jnp.maximum(h + b2[None, :, None, None], 0.0) + x


if __name__ == "__main__":
    key = jax.random.PRNGKey(0)
    k_x, k_w1, k_b1, k_w2, k_b2 = jax.random.split(key, 5)

    N, C, H, W = 2, 3, 16, 16          # module fixes C=3 (in/out channels)
    x = jax.random.normal(k_x, (N, C, H, W), dtype=jnp.float32)

    # Deterministic init mimicking nn.Conv2d defaults (uniform(-1/sqrt(fan_in), ..)).
    fan_in = C * 3 * 3
    bound = float(1.0 / (fan_in ** 0.5))
    w1 = jax.random.uniform(k_w1, (C, C, 3, 3), jnp.float32, -bound, bound)
    b1 = jax.random.uniform(k_b1, (C,), jnp.float32, -bound, bound)
    w2 = jax.random.uniform(k_w2, (C, C, 3, 3), jnp.float32, -bound, bound)
    b2 = jax.random.uniform(k_b2, (C,), jnp.float32, -bound, bound)

    out = jax.block_until_ready(simple_residual_block(x, w1, b1, w2, b2))
    ref = jax.block_until_ready(_reference(x, w1, b1, w2, b2))

    assert out.shape == (N, C, H, W)
    assert jnp.allclose(out, ref, atol=1e-4, rtol=1e-4), "mismatch vs reference"

    print("KERNEL_OK")
</pallas_src>

<mosaic_0001>
module attributes {stable_mosaic.version = 11 : i64} {
  func.func @_resblock_kernel(%arg0: memref<8x256xf32, #tpu.memory_space<vmem>>, %arg1: memref<8x72xf32, #tpu.memory_space<vmem>>, %arg2: memref<8x1xf32, #tpu.memory_space<vmem>>, %arg3: memref<8x72xf32, #tpu.memory_space<vmem>>, %arg4: memref<8x1xf32, #tpu.memory_space<vmem>>, %arg5: memref<6x256xf32, #tpu.memory_space<vmem>>) attributes {dimension_semantics = [], scalar_prefetch = 0 : i64, scratch_operands = 0 : i64, tpu.core_type = #tpu.core_type<tc>} {
    %c0 = arith.constant 0 : index
    %c0_0 = arith.constant 0 : index
    %0 = vector.load %arg0[%c0, %c0_0] : memref<8x256xf32, #tpu.memory_space<vmem>>, vector<8x256xf32>
    %1 = tpu.iota {dimensions = array<i32: 1>} : vector<8x256xi32>
    %c4_i32 = arith.constant 4 : i32
    %2 = vector.broadcast %c4_i32 : i32 to vector<8x256xi32>
    %3 = arith.shrsi %1, %2 : vector<8x256xi32>
    %c15_i32 = arith.constant 15 : i32
    %4 = vector.broadcast %c15_i32 : i32 to vector<8x256xi32>
    %5 = arith.andi %1, %4 : vector<8x256xi32>
    %c1_i32 = arith.constant 1 : i32
    %6 = vector.broadcast %c1_i32 : i32 to vector<8x256xi32>
    %7 = arith.cmpi sge, %3, %6 : vector<8x256xi32>
    %c1_i32_1 = arith.constant 1 : i32
    %8 = vector.broadcast %c1_i32_1 : i32 to vector<8x256xi32>
    %9 = arith.cmpi sge, %5, %8 : vector<8x256xi32>
    %10 = arith.andi %7, %9 : vector<8x256xi1>
    %c1_i32_2 = arith.constant 1 : i32
    %11 = vector.broadcast %c1_i32_2 : i32 to vector<8x256xi32>
    %12 = arith.cmpi sge, %3, %11 : vector<8x256xi32>
    %c1_i32_3 = arith.constant 1 : i32
    %13 = vector.broadcast %c1_i32_3 : i32 to vector<8x256xi32>
    %14 = arith.cmpi sge, %3, %13 : vector<8x256xi32>
    %c15_i32_4 = arith.constant 15 : i32
    %15 = vector.broadcast %c15_i32_4 : i32 to vector<8x256xi32>
    %16 = arith.cmpi slt, %5, %15 : vector<8x256xi32>
    %17 = arith.andi %14, %16 : vector<8x256xi1>
    %c1_i32_5 = arith.constant 1 : i32
    %18 = vector.broadcast %c1_i32_5 : i32 to vector<8x256xi32>
    %19 = arith.cmpi sge, %5, %18 : vector<8x256xi32>
    %c15_i32_6 = arith.constant 15 : i32
    %20 = vector.broadcast %c15_i32_6 : i32 to vector<8x256xi32>
    %21 = arith.cmpi slt, %5, %20 : vector<8x256xi32>
    %c15_i32_7 = arith.constant 15 : i32
    %22 = vector.broadcast %c15_i32_7 : i32 to vector<8x256xi32>
    %23 = arith.cmpi slt, %3, %22 : vector<8x256xi32>
    %c1_i32_8 = arith.constant 1 : i32
    %24 = vector.broadcast %c1_i32_8 : i32 to vector<8x256xi32>
    %25 = arith.cmpi sge, %5, %24 : vector<8x256xi32>
    %26 = arith.andi %23, %25 : vector<8x256xi1>
    %c15_i32_9 = arith.constant 15 : i32
    %27 = vector.broadcast %c15_i32_9 : i32 to vector<8x256xi32>
    %28 = arith.cmpi slt, %3, %27 : vector<8x256xi32>
    %c15_i32_10 = arith.constant 15 : i32
    %29 = vector.broadcast %c15_i32_10 : i32 to vector<8x256xi32>
    %30 = arith.cmpi slt, %3, %29 : vector<8x256xi32>
    %c15_i32_11 = arith.constant 15 : i32
    %31 = vector.broadcast %c15_i32_11 : i32 to vector<8x256xi32>
    %32 = arith.cmpi slt, %5, %31 : vector<8x256xi32>
    %33 = arith.andi %30, %32 : vector<8x256xi1>
    %c17_i32 = arith.constant 17 : i32
    %34 = tpu.dynamic_rotate %0 by %c17_i32 dim 1 : vector<8x256xf32>, i32 -> vector<8x256xf32>
    %cst = arith.constant 0.000000e+00 : f32
    %35 = vector.broadcast %cst : f32 to vector<8x256xf32>
    %36 = arith.select %10, %34, %35 : vector<8x256xi1>, vector<8x256xf32>
    %c16_i32 = arith.constant 16 : i32
    %37 = tpu.dynamic_rotate %0 by %c16_i32 dim 1 : vector<8x256xf32>, i32 -> vector<8x256xf32>
    %cst_12 = arith.constant 0.000000e+00 : f32
    %38 = vector.broadcast %cst_12 : f32 to vector<8x256xf32>
    %39 = arith.select %12, %37, %38 : vector<8x256xi1>, vector<8x256xf32>
    %c15_i32_13 = arith.constant 15 : i32
    %40 = tpu.dynamic_rotate %0 by %c15_i32_13 dim 1 : vector<8x256xf32>, i32 -> vector<8x256xf32>
    %cst_14 = arith.constant 0.000000e+00 : f32
    %41 = vector.broadcast %cst_14 : f32 to vector<8x256xf32>
    %42 = arith.select %17, %40, %41 : vector<8x256xi1>, vector<8x256xf32>
    %c1_i32_15 = arith.constant 1 : i32
    %43 = tpu.dynamic_rotate %0 by %c1_i32_15 dim 1 : vector<8x256xf32>, i32 -> vector<8x256xf32>
    %cst_16 = arith.constant 0.000000e+00 : f32
    %44 = vector.broadcast %cst_16 : f32 to vector<8x256xf32>
    %45 = arith.select %19, %43, %44 : vector<8x256xi1>, vector<8x256xf32>
    %c255_i32 = arith.constant 255 : i32
    %46 = tpu.dynamic_rotate %0 by %c255_i32 dim 1 : vector<8x256xf32>, i32 -> vector<8x256xf32>
    %cst_17 = arith.constant 0.000000e+00 : f32
    %47 = vector.broadcast %cst_17 : f32 to vector<8x256xf32>
    %48 = arith.select %21, %46, %47 : vector<8x256xi1>, vector<8x256xf32>
    %c241_i32 = arith.constant 241 : i32
    %49 = tpu.dynamic_rotate %0 by %c241_i32 dim 1 : vector<8x256xf32>, i32 -> vector<8x256xf32>
    %cst_18 = arith.constant 0.000000e+00 : f32
    %50 = vector.broadcast %cst_18 : f32 to vector<8x256xf32>
    %51 = arith.select %26, %49, %50 : vector<8x256xi1>, vector<8x256xf32>
    %c240_i32 = arith.constant 240 : i32
    %52 = tpu.dynamic_rotate %0 by %c240_i32 dim 1 : vector<8x256xf32>, i32 -> vector<8x256xf32>
    %cst_19 = arith.constant 0.000000e+00 : f32
    %53 = vector.broadcast %cst_19 : f32 to vector<8x256xf32>
    %54 = arith.select %28, %52, %53 : vector<8x256xi1>, vector<8x256xf32>
    %c239_i32 = arith.constant 239 : i32
    %55 = tpu.dynamic_rotate %0 by %c239_i32 dim 1 : vector<8x256xf32>, i32 -> vector<8x256xf32>
    %cst_20 = arith.constant 0.000000e+00 : f32
    %56 = vector.broadcast %cst_20 : f32 to vector<8x256xf32>
    %57 = arith.select %33, %55, %56 : vector<8x256xi1>, vector<8x256xf32>
    %58 = tpu.concatenate %36, %39, %42, %45, %0, %48, %51, %54, %57 in 0 : vector<8x256xf32>, vector<8x256xf32>, vector<8x256xf32>, vector<8x256xf32>, vector<8x256xf32>, vector<8x256xf32>, vector<8x256xf32>, vector<8x256xf32>, vector<8x256xf32> -> vector<72x256xf32>
    %c0_21 = arith.constant 0 : index
    %c0_22 = arith.constant 0 : index
    %59 = vector.load %arg1[%c0_21, %c0_22] : memref<8x72xf32, #tpu.memory_space<vmem>>, vector<8x72xf32>
    %cst_23 = arith.constant dense<0.000000e+00> : vector<8x256xf32>
    %60 = tpu.matmul %59, %58, %cst_23 {dimension_numbers = #tpu.dot_dimension_numbers<[1], [0], [0], [1], [0, 0, 1, 1], [], []>, precision = #tpu.contract_precision<fp32>} : vector<8x72xf32>, vector<72x256xf32>, vector<8x256xf32> -> vector<8x256xf32>
    %c0_24 = arith.constant 0 : index
    %c0_25 = arith.constant 0 : index
    %61 = vector.load %arg2[%c0_24, %c0_25] : memref<8x1xf32, #tpu.memory_space<vmem>>, vector<8x1xf32>
    %62 = vector.broadcast %61 : vector<8x1xf32> to vector<8x256xf32>
    %63 = arith.addf %60, %62 : vector<8x256xf32>
    %cst_26 = arith.constant 0.000000e+00 : f32
    %64 = vector.broadcast %cst_26 : f32 to vector<8x256xf32>
    %65 = arith.maximumf %63, %64 : vector<8x256xf32>
    %c17_i32_27 = arith.constant 17 : i32
    %66 = tpu.dynamic_rotate %65 by %c17_i32_27 dim 1 : vector<8x256xf32>, i32 -> vector<8x256xf32>
    %cst_28 = arith.constant 0.000000e+00 : f32
    %67 = vector.broadcast %cst_28 : f32 to vector<8x256xf32>
    %68 = arith.select %10, %66, %67 : vector<8x256xi1>, vector<8x256xf32>
    %c16_i32_29 = arith.constant 16 : i32
    %69 = tpu.dynamic_rotate %65 by %c16_i32_29 dim 1 : vector<8x256xf32>, i32 -> vector<8x256xf32>
    %cst_30 = arith.constant 0.000000e+00 : f32
    %70 = vector.broadcast %cst_30 : f32 to vector<8x256xf32>
    %71 = arith.select %12, %69, %70 : vector<8x256xi1>, vector<8x256xf32>
    %c15_i32_31 = arith.constant 15 : i32
    %72 = tpu.dynamic_rotate %65 by %c15_i32_31 dim 1 : vector<8x256xf32>, i32 -> vector<8x256xf32>
    %cst_32 = arith.constant 0.000000e+00 : f32
    %73 = vector.broadcast %cst_32 : f32 to vector<8x256xf32>
    %74 = arith.select %17, %72, %73 : vector<8x256xi1>, vector<8x256xf32>
    %c1_i32_33 = arith.constant 1 : i32
    %75 = tpu.dynamic_rotate %65 by %c1_i32_33 dim 1 : vector<8x256xf32>, i32 -> vector<8x256xf32>
    %cst_34 = arith.constant 0.000000e+00 : f32
    %76 = vector.broadcast %cst_34 : f32 to vector<8x256xf32>
    %77 = arith.select %19, %75, %76 : vector<8x256xi1>, vector<8x256xf32>
    %c255_i32_35 = arith.constant 255 : i32
    %78 = tpu.dynamic_rotate %65 by %c255_i32_35 dim 1 : vector<8x256xf32>, i32 -> vector<8x256xf32>
    %cst_36 = arith.constant 0.000000e+00 : f32
    %79 = vector.broadcast %cst_36 : f32 to vector<8x256xf32>
    %80 = arith.select %21, %78, %79 : vector<8x256xi1>, vector<8x256xf32>
    %c241_i32_37 = arith.constant 241 : i32
    %81 = tpu.dynamic_rotate %65 by %c241_i32_37 dim 1 : vector<8x256xf32>, i32 -> vector<8x256xf32>
    %cst_38 = arith.constant 0.000000e+00 : f32
    %82 = vector.broadcast %cst_38 : f32 to vector<8x256xf32>
    %83 = arith.select %26, %81, %82 : vector<8x256xi1>, vector<8x256xf32>
    %c240_i32_39 = arith.constant 240 : i32
    %84 = tpu.dynamic_rotate %65 by %c240_i32_39 dim 1 : vector<8x256xf32>, i32 -> vector<8x256xf32>
    %cst_40 = arith.constant 0.000000e+00 : f32
    %85 = vector.broadcast %cst_40 : f32 to vector<8x256xf32>
    %86 = arith.select %28, %84, %85 : vector<8x256xi1>, vector<8x256xf32>
    %c239_i32_41 = arith.constant 239 : i32
    %87 = tpu.dynamic_rotate %65 by %c239_i32_41 dim 1 : vector<8x256xf32>, i32 -> vector<8x256xf32>
    %cst_42 = arith.constant 0.000000e+00 : f32
    %88 = vector.broadcast %cst_42 : f32 to vector<8x256xf32>
    %89 = arith.select %33, %87, %88 : vector<8x256xi1>, vector<8x256xf32>
    %90 = tpu.concatenate %68, %71, %74, %77, %65, %80, %83, %86, %89 in 0 : vector<8x256xf32>, vector<8x256xf32>, vector<8x256xf32>, vector<8x256xf32>, vector<8x256xf32>, vector<8x256xf32>, vector<8x256xf32>, vector<8x256xf32>, vector<8x256xf32> -> vector<72x256xf32>
    %c0_43 = arith.constant 0 : index
    %c0_44 = arith.constant 0 : index
    %91 = vector.load %arg3[%c0_43, %c0_44] : memref<8x72xf32, #tpu.memory_space<vmem>>, vector<8x72xf32>
    %cst_45 = arith.constant dense<0.000000e+00> : vector<8x256xf32>
    %92 = tpu.matmul %91, %90, %cst_45 {dimension_numbers = #tpu.dot_dimension_numbers<[1], [0], [0], [1], [0, 0, 1, 1], [], []>, precision = #tpu.contract_precision<fp32>} : vector<8x72xf32>, vector<72x256xf32>, vector<8x256xf32> -> vector<8x256xf32>
    %c0_46 = arith.constant 0 : index
    %c0_47 = arith.constant 0 : index
    %93 = vector.load %arg4[%c0_46, %c0_47] : memref<8x1xf32, #tpu.memory_space<vmem>>, vector<8x1xf32>
    %94 = vector.broadcast %93 : vector<8x1xf32> to vector<8x256xf32>
    %95 = arith.addf %92, %94 : vector<8x256xf32>
    %cst_48 = arith.constant 0.000000e+00 : f32
    %96 = vector.broadcast %cst_48 : f32 to vector<8x256xf32>
    %97 = arith.maximumf %95, %96 : vector<8x256xf32>
    %98 = vector.extract_strided_slice %97 {offsets = [0, 0], sizes = [6, 256], strides = [1, 1]} : vector<8x256xf32> to vector<6x256xf32>
    %99 = vector.extract_strided_slice %0 {offsets = [0, 0], sizes = [6, 256], strides = [1, 1]} : vector<8x256xf32> to vector<6x256xf32>
    %100 = arith.addf %98, %99 : vector<6x256xf32>
    %c0_49 = arith.constant 0 : index
    %c0_50 = arith.constant 0 : index
    %101 = vector.load %arg5[%c0_49, %c0_50] : memref<6x256xf32, #tpu.memory_space<vmem>>, vector<6x256xf32>
    tpu.vector_store %arg5[%c0_49, %c0_50], %100 {strides = array<i32>} : memref<6x256xf32, #tpu.memory_space<vmem>>, vector<6x256xf32>,
    return
  }
}

</mosaic_0001>

<llo_original>
// kernel: tpu_custom_call.1
$region0: #{tpu_custom_call.1}
  #allocation0 [shape = 'u32[]', space=smem, size = 0x4, offset = 0x4, fixed_abs, tag = 'smem constant byte address 0x4 - core index']
  #allocation1 [shape = 'u32[144,128]{1,0:T(1,128)}', space=vmem, size = 0x12000, scoped, tag = 'internal scratch']
  %s0 = inlined_call_operand.vmem [shape: f32[8,256], index: 0, kind: input, shape index: {}]
  %s1 = inlined_call_operand.hbm [shape: f32[8,72], index: 1, kind: input, shape index: {}]
  %s2 = inlined_call_operand.vmem [shape: f32[8,1], index: 2, kind: input, shape index: {}]
  %s3 = inlined_call_operand.hbm [shape: f32[8,72], index: 3, kind: input, shape index: {}]
  %s4 = inlined_call_operand.vmem [shape: f32[8,1], index: 4, kind: input, shape index: {}]
  %s5 = inlined_call_operand.hbm [shape: f32[6,256], index: 5, kind: output, shape index: {}]
  %s6 = sld [smem:[#allocation0]]
  $region38: #{tpu_custom_call.1} parent=0
    _
  %s8 = ssub.s32 1, %s6
  %s9 = scalar_select 0, %s8, %s6
  $region1: #{tpu_custom_call.1} parent=0
    #allocation2 [shape = 'u8[4096]{0}', space=vmem, size = 0x1000, scoped, tag = 'input window, operand 1, single buffered']
    #allocation3 [shape = 's32[1]{0}', space=sflag, size = 0x4, scoped, tag = 'scoped memory for tpu_custom_call.1']
    #allocation4 [shape = 's32[1]{0}', space=sflag, size = 0x4, scoped, tag = 'scoped memory for tpu_custom_call.1']
    #allocation5 [shape = 'u8[4096]{0}', space=vmem, size = 0x1000, scoped, tag = 'input window, operand 3, single buffered']
    #allocation6 [shape = 's32[1]{0}', space=sflag, size = 0x4, scoped, tag = 'scoped memory for tpu_custom_call.1']
    #allocation7 [shape = 'u8[8192]{0}', space=vmem, size = 0x2000, scoped, tag = 'output window, operand 0, single buffered']
    %10 = vsyncpa [#allocation3], 0
    %11 = vsyncpa [#allocation6], 0
    %12 = vsyncpa [#allocation4], 0
    // Predicated region
    $region2: #{tpu_custom_call.1} parent=1 // pred_check
      _
    $region3: #{tpu_custom_call.1} parent=1 // pred_check_branch
      %14 = sbr.rel (0) target = $region5
    $region4: #{tpu_custom_call.1} parent=1 // pred_region
      _
    $region5: #{tpu_custom_call.1} parent=1 // pred_fallthru
      _
    // Predicated region
    $region6: #{tpu_custom_call.1} parent=1 // pred_check
      _
    $region7: #{tpu_custom_call.1} parent=1 // pred_check_branch
      %16 = sbr.rel (0) target = $region9
    $region8: #{tpu_custom_call.1} parent=1 // pred_region
      %s18 = ssub.s32 128, 128
      %19 = vsyncadd [#allocation3], %s18
      %s21 = sshll.u32 [#allocation2], 4
      %s22 = int_to_ptr.vmem [resolvable:$true] %s21
      %24 = dma.hbm_to_vmem [thread:$0]  %s1, 128, %s22, [#allocation3]
    $region9: #{tpu_custom_call.1} parent=1 // pred_fallthru
      _
    // Predicated region
    $region10: #{tpu_custom_call.1} parent=1 // pred_check
      _
    $region11: #{tpu_custom_call.1} parent=1 // pred_check_branch
      %26 = sbr.rel (0) target = $region13
    $region12: #{tpu_custom_call.1} parent=1 // pred_region
      _
    $region13: #{tpu_custom_call.1} parent=1 // pred_fallthru
      _
    // Predicated region
    $region14: #{tpu_custom_call.1} parent=1 // pred_check
      _
    $region15: #{tpu_custom_call.1} parent=1 // pred_check_branch
      %28 = sbr.rel (0) target = $region17
    $region16: #{tpu_custom_call.1} parent=1 // pred_region
      %s30 = ssub.s32 128, 128
      %31 = vsyncadd [#allocation6], %s30
      %s33 = sshll.u32 [#allocation5], 4
      %s34 = int_to_ptr.vmem [resolvable:$true] %s33
      %36 = dma.hbm_to_vmem [thread:$0]  %s3, 128, %s34, [#allocation6]
    $region17: #{tpu_custom_call.1} parent=1 // pred_fallthru
      _
    // Predicated region
    $region18: #{tpu_custom_call.1} parent=1 // pred_check
      _
    $region19: #{tpu_custom_call.1} parent=1 // pred_check_branch
      %38 = sbr.rel (0) target = $region21
    $region20: #{tpu_custom_call.1} parent=1 // pred_region
      _
    $region21: #{tpu_custom_call.1} parent=1 // pred_fallthru
      _
    // Predicated region
    $region22: #{tpu_custom_call.1} parent=1 // pred_check
      _
    $region23: #{tpu_custom_call.1} parent=1 // pred_check_branch
      %40 = sbr.rel (0) target = $region25
    $region24: #{tpu_custom_call.1} parent=1 // pred_region
      %41 = dma.done [#allocation3], 128
    $region25: #{tpu_custom_call.1} parent=1 // pred_fallthru
      _
    // Predicated region
    $region26: #{tpu_custom_call.1} parent=1 // pred_check
      _
    $region27: #{tpu_custom_call.1} parent=1 // pred_check_branch
      %43 = sbr.rel (0) target = $region29
    $region28: #{tpu_custom_call.1} parent=1 // pred_region
      %44 = dma.done [#allocation6], 128
    $region29: #{tpu_custom_call.1} parent=1 // pred_fallthru
      _
    %v45 = vld [vmem:[%s0] sm:$0xff]
    %v46 = vld [vmem:[%s0 + $0x8] sm:$0xff]
    %v47 = vlaneseq
    %v48 = vand.u32 %v47, 127
    %v49 = vadd.s32 %v48, 128
    %v50 = vshra.s32 %v48, 4
    %v51 = vshra.s32 %v49, 4
    %v52 = vand.u32 %v48, 15
    %v53 = vand.u32 %v49, 15
    %vm54 = vcmp.ge.s32.totalorder %v50, 1
    %vm55 = vcmp.ge.s32.totalorder %v51, 1
    %vm56 = vcmp.ge.s32.totalorder %v52, 1
    %vm57 = vcmp.ge.s32.totalorder %v53, 1
    %vm58 = vmand %vm54, %vm56
    %vm59 = vmand %vm55, %vm57
    %vm60 = vcmp.lt.s32.totalorder %v52, 15
    %vm61 = vcmp.lt.s32.totalorder %v53, 15
    %vm62 = vmand %vm54, %vm60
    %vm63 = vmand %vm55, %vm61
    %vm64 = vcmp.lt.s32.totalorder %v50, 15
    %vm65 = vcmp.lt.s32.totalorder %v51, 15
    %vm66 = vmand %vm64, %vm56
    %vm67 = vmand %vm65, %vm57
    %vm68 = vmand %vm64, %vm60
    %vm69 = vmand %vm65, %vm61
    %70 = vrot.lane.b32.xlu0 %v45, 17
    %v71 = vpop.permute.xlu0 %70
    %72 = vrot.lane.b32.xlu0 %v46, 17
    %v73 = vpop.permute.xlu0 %72
    %vm74 = vcmp.lt.s32.totalorder %v48, 17
    %v75 = vsel %vm74, %v71, %v73
    %v76 = vsel %vm74, %v73, %v71
    %v77 = vsel %vm58, %v76, 0.0
    %v78 = vsel %vm59, %v75, 0.0
    %79 = vrot.lane.b32.xlu0 %v45, 16
    %v80 = vpop.permute.xlu0 %79
    %81 = vrot.lane.b32.xlu0 %v46, 16
    %v82 = vpop.permute.xlu0 %81
    %vm83 = vcmp.lt.s32.totalorder %v48, 16
    %v84 = vsel %vm83, %v80, %v82
    %v85 = vsel %vm83, %v82, %v80
    %v86 = vsel %vm54, %v85, 0.0
    %v87 = vsel %vm55, %v84, 0.0
    %88 = vrot.lane.b32.xlu0 %v45, 15
    %v89 = vpop.permute.xlu0 %88
    %90 = vrot.lane.b32.xlu0 %v46, 15
    %v91 = vpop.permute.xlu0 %90
    %vm92 = vcmp.lt.s32.totalorder %v48, 15
    %v93 = vsel %vm92, %v89, %v91
    %v94 = vsel %vm92, %v91, %v89
    %v95 = vsel %vm62, %v94, 0.0
    %v96 = vsel %vm63, %v93, 0.0
    %97 = vrot.lane.b32.xlu0 %v45, 1
    %v98 = vpop.permute.xlu0 %97
    %99 = vrot.lane.b32.xlu0 %v46, 1
    %v100 = vpop.permute.xlu0 %99
    %vm101 = vcmp.lt.s32.totalorder %v48, 1
    %v102 = vsel %vm101, %v98, %v100
    %v103 = vsel %vm101, %v100, %v98
    %v104 = vsel %vm56, %v103, 0.0
    %v105 = vsel %vm57, %v102, 0.0
    %106 = vrot.lane.b32.xlu0 %v45, 127
    %v107 = vpop.permute.xlu0 %106
    %108 = vrot.lane.b32.xlu0 %v46, 127
    %v109 = vpop.permute.xlu0 %108
    %vm110 = vcmp.lt.s32.totalorder %v48, 127
    %v111 = vsel %vm110, %v107, %v109
    %v112 = vsel %vm110, %v109, %v107
    %v113 = vsel %vm60, %v111, 0.0
    %v114 = vsel %vm61, %v112, 0.0
    %115 = vrot.lane.b32.xlu0 %v45, 113
    %v116 = vpop.permute.xlu0 %115
    %117 = vrot.lane.b32.xlu0 %v46, 113
    %v118 = vpop.permute.xlu0 %117
    %vm119 = vcmp.lt.s32.totalorder %v48, 113
    %v120 = vsel %vm119, %v116, %v118
    %v121 = vsel %vm119, %v118, %v116
    %v122 = vsel %vm66, %v120, 0.0
    %v123 = vsel %vm67, %v121, 0.0
    %124 = vrot.lane.b32.xlu0 %v45, 112
    %v125 = vpop.permute.xlu0 %124
    %126 = vrot.lane.b32.xlu0 %v46, 112
    %v127 = vpop.permute.xlu0 %126
    %vm128 = vcmp.lt.s32.totalorder %v48, 112
    %v129 = vsel %vm128, %v125, %v127
    %v130 = vsel %vm128, %v127, %v125
    %v131 = vsel %vm64, %v129, 0.0
    %v132 = vsel %vm65, %v130, 0.0
    %133 = vrot.lane.b32.xlu0 %v45, 111
    %v134 = vpop.permute.xlu0 %133
    %135 = vrot.lane.b32.xlu0 %v46, 111
    %v136 = vpop.permute.xlu0 %135
    %vm137 = vcmp.lt.s32.totalorder %v48, 111
    %v138 = vsel %vm137, %v134, %v136
    %v139 = vsel %vm137, %v136, %v134
    %v140 = vsel %vm68, %v138, 0.0
    %v141 = vsel %vm69, %v139, 0.0
    %v142 = vld [vmem:[#allocation2] sm:$0xff]
    %v143 = vld [vmem:[%s2] sm:$0xff]
    %145 = vset.pattern.permute.xlu0 0
    %146 = vperm.xlu0 %145, %v143
    %v147 = vpop.permute.xlu0 %146
    %vm149 = vcmask 588800
    %v151 = vsel %vm149, %v142, 0
    %153 = vmatprep.subr.mxu0 0.0
    %154 = vmatpush1.msra.mxu0 0.0
    %155 = vmatprep.subr.mxu0 0.0
    %156 = vmatpush1.msra.mxu0 0.0
    %157 = vmatprep.subr.mxu0 0.0
    %158 = vmatpush1.msra.mxu0 0.0
    %159 = vmatprep.subr.mxu0 0.0
    %160 = vmatpush1.msra.mxu0 0.0
    %161 = vmatprep.subr.mxu0 0.0
    %162 = vmatpush1.msra.mxu0 0.0
    %163 = vmatprep.subr.mxu0 0.0
    %164 = vmatpush1.msra.mxu0 0.0
    %165 = vmatprep.subr.mxu0 0.0
    %166 = vmatpush1.msra.mxu0 0.0
    %v167 = vand.u32 %v141, 4294901760
    %168 = vmatprep.subr.mxu0 %v167
    %v169 = vand.u32 %v140, 4294901760
    %170 = vmatpush1.msra.mxu0 %v169
    %v171 = vand.u32 %v132, 4294901760
    %172 = vmatprep.subr.mxu0 %v171
    %v173 = vand.u32 %v131, 4294901760
    %174 = vmatpush1.msra.mxu0 %v173
    %v175 = vand.u32 %v123, 4294901760
    %176 = vmatprep.subr.mxu0 %v175
    %v177 = vand.u32 %v122, 4294901760
    %178 = vmatpush1.msra.mxu0 %v177
    %v179 = vand.u32 %v114, 4294901760
    %180 = vmatprep.subr.mxu0 %v179
    %v181 = vand.u32 %v113, 4294901760
    %182 = vmatpush1.msra.mxu0 %v181
    %v183 = vand.u32 %v46, 4294901760
    %184 = vmatprep.subr.mxu0 %v183
    %v185 = vand.u32 %v45, 4294901760
    %186 = vmatpush1.msra.mxu0 %v185
    %v187 = vand.u32 %v105, 4294901760
    %188 = vmatprep.subr.mxu0 %v187
    %v189 = vand.u32 %v104, 4294901760
    %190 = vmatpush1.msra.mxu0 %v189
    %v191 = vand.u32 %v96, 4294901760
    %192 = vmatprep.subr.mxu0 %v191
    %v193 = vand.u32 %v95, 4294901760
    %194 = vmatpush1.msra.mxu0 %v193
    %v195 = vand.u32 %v87, 4294901760
    %196 = vmatprep.subr.mxu0 %v195
    %v197 = vand.u32 %v86, 4294901760
    %198 = vmatpush1.msra.mxu0 %v197
    %v199 = vand.u32 %v78, 4294901760
    %200 = vmatprep.subr.mxu0 %v199
    %v201 = vand.u32 %v77, 4294901760
    %202 = vmatpush1.msra.mxu0 %v201
    %203 = vmatprep.subr.mxu0 0.0
    %204 = vmatpush2.msra.mxu0 0.0
    %205 = vmatprep.subr.mxu0 0.0
    %206 = vmatpush2.msra.mxu0 0.0
    %207 = vmatprep.subr.mxu0 0.0
    %208 = vmatpush2.msra.mxu0 0.0
    %209 = vmatprep.subr.mxu0 0.0
    %210 = vmatpush2.msra.mxu0 0.0
    %211 = vmatprep.subr.mxu0 0.0
    %212 = vmatpush2.msra.mxu0 0.0
    %213 = vmatprep.subr.mxu0 0.0
    %214 = vmatpush2.msra.mxu0 0.0
    %215 = vmatprep.subr.mxu0 0.0
    %216 = vmatpush2.msra.mxu0 0.0
    %217 = vmatprep.subr.mxu0 0.0
    %218 = vmatpush2.msra.mxu0 0.0
    %219 = vmatprep.subr.mxu0 0.0
    %220 = vmatpush2.msra.mxu0 0.0
    %221 = vmatprep.subr.mxu0 0.0
    %222 = vmatpush2.msra.mxu0 0.0
    %223 = vmatprep.subr.mxu0 0.0
    %224 = vmatpush2.msra.mxu0 0.0
    %225 = vmatprep.subr.mxu0 0.0
    %226 = vmatpush2.msra.mxu0 0.0
    %227 = vmatprep.subr.mxu0 0.0
    %228 = vmatpush2.msra.mxu0 0.0
    %229 = vmatprep.subr.mxu0 0.0
    %230 = vmatpush2.msra.mxu0 0.0
    %231 = vmatprep.subr.mxu0 0.0
    %232 = vmatpush2.msra.mxu0 0.0
    %233 = vmatprep.subr.mxu0 0.0
    %234 = vmatpush2.msra.mxu0 0.0
    %235 = vmatprep.mubr.f32.mxu0 0.0
    %v236 = vand.u32 %v151, 4294901760
    %v237 = vsub.f32 %v151, %v236
    %v238 = vand.u32 %v237, 4294901760
    %v239 = vsub.f32 %v237, %v238
    %v240 = vand.u32 %v239, 4294901760
    %241 = vmatmul.mubr.f32.gmra.mxu0 %v240
    %v242 = vpop.f32.mrf.mxu0
    %v243 = vadd.f32 %v147, %v242
    %v244 = vpop.f32.mrf.mxu0
    %v245 = vadd.f32 %v147, %v244
    %246 = vdwg.mxu0
    %247 = vmatprep.subr.mxu0 0.0
    %248 = vmatpush1.msra.mxu0 0.0
    %249 = vmatprep.subr.mxu0 0.0
    %250 = vmatpush1.msra.mxu0 0.0
    %251 = vmatprep.subr.mxu0 0.0
    %252 = vmatpush1.msra.mxu0 0.0
    %253 = vmatprep.subr.mxu0 0.0
    %254 = vmatpush1.msra.mxu0 0.0
    %255 = vmatprep.subr.mxu0 0.0
    %256 = vmatpush1.msra.mxu0 0.0
    %257 = vmatprep.subr.mxu0 0.0
    %258 = vmatpush1.msra.mxu0 0.0
    %259 = vmatprep.subr.mxu0 0.0
    %260 = vmatpush1.msra.mxu0 0.0
    %v261 = vand.u32 %v141, 4294901760
    %v262 = vsub.f32 %v141, %v261
    %v263 = vand.u32 %v262, 4294901760
    %v264 = vsub.f32 %v262, %v263
    %v265 = vand.u32 %v264, 4294901760
    %266 = vmatprep.subr.mxu0 %v265
    %v267 = vand.u32 %v140, 4294901760
    %v268 = vsub.f32 %v140, %v267
    %v269 = vand.u32 %v268, 4294901760
    %v270 = vsub.f32 %v268, %v269
    %v271 = vand.u32 %v270, 4294901760
    %272 = vmatpush1.msra.mxu0 %v271
    %v273 = vand.u32 %v132, 4294901760
    %v274 = vsub.f32 %v132, %v273
    %v275 = vand.u32 %v274, 4294901760
    %v276 = vsub.f32 %v274, %v275
    %v277 = vand.u32 %v276, 4294901760
    %278 = vmatprep.subr.mxu0 %v277
    %v279 = vand.u32 %v131, 4294901760
    %v280 = vsub.f32 %v131, %v279
    %v281 = vand.u32 %v280, 4294901760
    %v282 = vsub.f32 %v280, %v281
    %v283 = vand.u32 %v282, 4294901760
    %284 = vmatpush1.msra.mxu0 %v283
    %v285 = vand.u32 %v123, 4294901760
    %v286 = vsub.f32 %v123, %v285
    %v287 = vand.u32 %v286, 4294901760
    %v288 = vsub.f32 %v286, %v287
    %v289 = vand.u32 %v288, 4294901760
    %290 = vmatprep.subr.mxu0 %v289
    %v291 = vand.u32 %v122, 4294901760
    %v292 = vsub.f32 %v122, %v291
    %v293 = vand.u32 %v292, 4294901760
    %v294 = vsub.f32 %v292, %v293
    %v295 = vand.u32 %v294, 4294901760
    %296 = vmatpush1.msra.mxu0 %v295
    %v297 = vand.u32 %v114, 4294901760
    %v298 = vsub.f32 %v114, %v297
    %v299 = vand.u32 %v298, 4294901760
    %v300 = vsub.f32 %v298, %v299
    %v301 = vand.u32 %v300, 4294901760
    %302 = vmatprep.subr.mxu0 %v301
    %v303 = vand.u32 %v113, 4294901760
    %v304 = vsub.f32 %v113, %v303
    %v305 = vand.u32 %v304, 4294901760
    %v306 = vsub.f32 %v304, %v305
    %v307 = vand.u32 %v306, 4294901760
    %308 = vmatpush1.msra.mxu0 %v307
    %v309 = vand.u32 %v46, 4294901760
    %v310 = vsub.f32 %v46, %v309
    %v311 = vand.u32 %v310, 4294901760
    %v312 = vsub.f32 %v310, %v311
    %v313 = vand.u32 %v312, 4294901760
    %314 = vmatprep.subr.mxu0 %v313
    %v315 = vand.u32 %v45, 4294901760
    %v316 = vsub.f32 %v45, %v315
    %v317 = vand.u32 %v316, 4294901760
    %v318 = vsub.f32 %v316, %v317
    %v319 = vand.u32 %v318, 4294901760
    %320 = vmatpush1.msra.mxu0 %v319
    %v321 = vand.u32 %v105, 4294901760
    %v322 = vsub.f32 %v105, %v321
    %v323 = vand.u32 %v322, 4294901760
    %v324 = vsub.f32 %v322, %v323
    %v325 = vand.u32 %v324, 4294901760
    %326 = vmatprep.subr.mxu0 %v325
    %v327 = vand.u32 %v104, 4294901760
    %v328 = vsub.f32 %v104, %v327
    %v329 = vand.u32 %v328, 4294901760
    %v330 = vsub.f32 %v328, %v329
    %v331 = vand.u32 %v330, 4294901760
    %332 = vmatpush1.msra.mxu0 %v331
    %v333 = vand.u32 %v96, 4294901760
    %v334 = vsub.f32 %v96, %v333
    %v335 = vand.u32 %v334, 4294901760
    %v336 = vsub.f32 %v334, %v335
    %v337 = vand.u32 %v336, 4294901760
    %338 = vmatprep.subr.mxu0 %v337
    %v339 = vand.u32 %v95, 4294901760
    %v340 = vsub.f32 %v95, %v339
    %v341 = vand.u32 %v340, 4294901760
    %v342 = vsub.f32 %v340, %v341
    %v343 = vand.u32 %v342, 4294901760
    %344 = vmatpush1.msra.mxu0 %v343
    %v345 = vand.u32 %v87, 4294901760
    %v346 = vsub.f32 %v87, %v345
    %v347 = vand.u32 %v346, 4294901760
    %v348 = vsub.f32 %v346, %v347
    %v349 = vand.u32 %v348, 4294901760
    %350 = vmatprep.subr.mxu0 %v349
    %v351 = vand.u32 %v86, 4294901760
    %v352 = vsub.f32 %v86, %v351
    %v353 = vand.u32 %v352, 4294901760
    %v354 = vsub.f32 %v352, %v353
    %v355 = vand.u32 %v354, 4294901760
    %356 = vmatpush1.msra.mxu0 %v355
    %v357 = vand.u32 %v78, 4294901760
    %v358 = vsub.f32 %v78, %v357
    %v359 = vand.u32 %v358, 4294901760
    %v360 = vsub.f32 %v358, %v359
    %v361 = vand.u32 %v360, 4294901760
    %362 = vmatprep.subr.mxu0 %v361
    %v363 = vand.u32 %v77, 4294901760
    %v364 = vsub.f32 %v77, %v363
    %v365 = vand.u32 %v364, 4294901760
    %v366 = vsub.f32 %v364, %v365
    %v367 = vand.u32 %v366, 4294901760
    %368 = vmatpush1.msra.mxu0 %v367
    %369 = vmatprep.subr.mxu0 0.0
    %370 = vmatpush2.msra.mxu0 0.0
    %371 = vmatprep.subr.mxu0 0.0
    %372 = vmatpush2.msra.mxu0 0.0
    %373 = vmatprep.subr.mxu0 0.0
    %374 = vmatpush2.msra.mxu0 0.0
    %375 = vmatprep.subr.mxu0 0.0
    %376 = vmatpush2.msra.mxu0 0.0
    %377 = vmatprep.subr.mxu0 0.0
    %378 = vmatpush2.msra.mxu0 0.0
    %379 = vmatprep.subr.mxu0 0.0
    %380 = vmatpush2.msra.mxu0 0.0
    %381 = vmatprep.subr.mxu0 0.0
    %382 = vmatpush2.msra.mxu0 0.0
    %383 = vmatprep.subr.mxu0 0.0
    %384 = vmatpush2.msra.mxu0 0.0
    %385 = vmatprep.subr.mxu0 0.0
    %386 = vmatpush2.msra.mxu0 0.0
    %387 = vmatprep.subr.mxu0 0.0
    %388 = vmatpush2.msra.mxu0 0.0
    %389 = vmatprep.subr.mxu0 0.0
    %390 = vmatpush2.msra.mxu0 0.0
    %391 = vmatprep.subr.mxu0 0.0
    %392 = vmatpush2.msra.mxu0 0.0
    %393 = vmatprep.subr.mxu0 0.0
    %394 = vmatpush2.msra.mxu0 0.0
    %395 = vmatprep.subr.mxu0 0.0
    %396 = vmatpush2.msra.mxu0 0.0
    %397 = vmatprep.subr.mxu0 0.0
    %398 = vmatpush2.msra.mxu0 0.0
    %399 = vmatprep.subr.mxu0 0.0
    %400 = vmatpush2.msra.mxu0 0.0
    %401 = vmatprep.mubr.f32.mxu0 0.0
    %v402 = vand.u32 %v151, 4294901760
    %403 = vmatmul.mubr.f32.gmra.mxu0 %v402
    %v404 = vpop.f32.mrf.mxu0
    %v405 = vadd.f32 %v243, %v404
    %v406 = vpop.f32.mrf.mxu0
    %v407 = vadd.f32 %v245, %v406
    %408 = vdwg.mxu0
    %409 = vmatprep.subr.mxu0 0.0
    %410 = vmatpush1.msra.mxu0 0.0
    %411 = vmatprep.subr.mxu0 0.0
    %412 = vmatpush1.msra.mxu0 0.0
    %413 = vmatprep.subr.mxu0 0.0
    %414 = vmatpush1.msra.mxu0 0.0
    %415 = vmatprep.subr.mxu0 0.0
    %416 = vmatpush1.msra.mxu0 0.0
    %417 = vmatprep.subr.mxu0 0.0
    %418 = vmatpush1.msra.mxu0 0.0
    %419 = vmatprep.subr.mxu0 0.0
    %420 = vmatpush1.msra.mxu0 0.0
    %421 = vmatprep.subr.mxu0 0.0
    %422 = vmatpush1.msra.mxu0 0.0
    %v423 = vand.u32 %v141, 4294901760
    %v424 = vsub.f32 %v141, %v423
    %425 = vmatprep.subr.mxu0 %v424
    %v426 = vand.u32 %v140, 4294901760
    %v427 = vsub.f32 %v140, %v426
    %428 = vmatpush1.msra.mxu0 %v427
    %v429 = vand.u32 %v132, 4294901760
    %v430 = vsub.f32 %v132, %v429
    %431 = vmatprep.subr.mxu0 %v430
    %v432 = vand.u32 %v131, 4294901760
    %v433 = vsub.f32 %v131, %v432
    %434 = vmatpush1.msra.mxu0 %v433
    %v435 = vand.u32 %v123, 4294901760
    %v436 = vsub.f32 %v123, %v435
    %437 = vmatprep.subr.mxu0 %v436
    %v438 = vand.u32 %v122, 4294901760
    %v439 = vsub.f32 %v122, %v438
    %440 = vmatpush1.msra.mxu0 %v439
    %v441 = vand.u32 %v114, 4294901760
    %v442 = vsub.f32 %v114, %v441
    %443 = vmatprep.subr.mxu0 %v442
    %v444 = vand.u32 %v113, 4294901760
    %v445 = vsub.f32 %v113, %v444
    %446 = vmatpush1.msra.mxu0 %v445
    %v447 = vand.u32 %v46, 4294901760
    %v448 = vsub.f32 %v46, %v447
    %449 = vmatprep.subr.mxu0 %v448
    %v450 = vand.u32 %v45, 4294901760
    %v451 = vsub.f32 %v45, %v450
    %452 = vmatpush1.msra.mxu0 %v451
    %v453 = vand.u32 %v105, 4294901760
    %v454 = vsub.f32 %v105, %v453
    %455 = vmatprep.subr.mxu0 %v454
    %v456 = vand.u32 %v104, 4294901760
    %v457 = vsub.f32 %v104, %v456
    %458 = vmatpush1.msra.mxu0 %v457
    %v459 = vand.u32 %v96, 4294901760
    %v460 = vsub.f32 %v96, %v459
    %461 = vmatprep.subr.mxu0 %v460
    %v462 = vand.u32 %v95, 4294901760
    %v463 = vsub.f32 %v95, %v462
    %464 = vmatpush1.msra.mxu0 %v463
    %v465 = vand.u32 %v87, 4294901760
    %v466 = vsub.f32 %v87, %v465
    %467 = vmatprep.subr.mxu0 %v466
    %v468 = vand.u32 %v86, 4294901760
    %v469 = vsub.f32 %v86, %v468
    %470 = vmatpush1.msra.mxu0 %v469
    %v471 = vand.u32 %v78, 4294901760
    %v472 = vsub.f32 %v78, %v471
    %473 = vmatprep.subr.mxu0 %v472
    %v474 = vand.u32 %v77, 4294901760
    %v475 = vsub.f32 %v77, %v474
    %476 = vmatpush1.msra.mxu0 %v475
    %477 = vmatprep.subr.mxu0 0.0
    %478 = vmatpush2.msra.mxu0 0.0
    %479 = vmatprep.subr.mxu0 0.0
    %480 = vmatpush2.msra.mxu0 0.0
    %481 = vmatprep.subr.mxu0 0.0
    %482 = vmatpush2.msra.mxu0 0.0
    %483 = vmatprep.subr.mxu0 0.0
    %484 = vmatpush2.msra.mxu0 0.0
    %485 = vmatprep.subr.mxu0 0.0
    %486 = vmatpush2.msra.mxu0 0.0
    %487 = vmatprep.subr.mxu0 0.0
    %488 = vmatpush2.msra.mxu0 0.0
    %489 = vmatprep.subr.mxu0 0.0
    %490 = vmatpush2.msra.mxu0 0.0
    %491 = vmatprep.subr.mxu0 0.0
    %492 = vmatpush2.msra.mxu0 0.0
    %493 = vmatprep.subr.mxu0 0.0
    %494 = vmatpush2.msra.mxu0 0.0
    %495 = vmatprep.subr.mxu0 0.0
    %496 = vmatpush2.msra.mxu0 0.0
    %497 = vmatprep.subr.mxu0 0.0
    %498 = vmatpush2.msra.mxu0 0.0
    %499 = vmatprep.subr.mxu0 0.0
    %500 = vmatpush2.msra.mxu0 0.0
    %501 = vmatprep.subr.mxu0 0.0
    %502 = vmatpush2.msra.mxu0 0.0
    %503 = vmatprep.subr.mxu0 0.0
    %504 = vmatpush2.msra.mxu0 0.0
    %505 = vmatprep.subr.mxu0 0.0
    %506 = vmatpush2.msra.mxu0 0.0
    %507 = vmatprep.subr.mxu0 0.0
    %508 = vmatpush2.msra.mxu0 0.0
    %509 = vmatprep.mubr.f32.mxu0 0.0
    %v510 = vand.u32 %v151, 4294901760
    %v511 = vsub.f32 %v151, %v510
    %512 = vmatmul.mubr.f32.gmra.mxu0 %v511
    %v513 = vpop.f32.mrf.mxu0
    %v514 = vadd.f32 %v405, %v513
    %v515 = vpop.f32.mrf.mxu0
    %v516 = vadd.f32 %v407, %v515
    %517 = vdwg.mxu0
    %518 = vmatprep.subr.mxu0 0.0
    %519 = vmatpush1.msra.mxu0 0.0
    %520 = vmatprep.subr.mxu0 0.0
    %521 = vmatpush1.msra.mxu0 0.0
    %522 = vmatprep.subr.mxu0 0.0
    %523 = vmatpush1.msra.mxu0 0.0
    %524 = vmatprep.subr.mxu0 0.0
    %525 = vmatpush1.msra.mxu0 0.0
    %526 = vmatprep.subr.mxu0 0.0
    %527 = vmatpush1.msra.mxu0 0.0
    %528 = vmatprep.subr.mxu0 0.0
    %529 = vmatpush1.msra.mxu0 0.0
    %530 = vmatprep.subr.mxu0 0.0
    %531 = vmatpush1.msra.mxu0 0.0
    %v532 = vand.u32 %v141, 4294901760
    %533 = vmatprep.subr.mxu0 %v532
    %v534 = vand.u32 %v140, 4294901760
    %535 = vmatpush1.msra.mxu0 %v534
    %v536 = vand.u32 %v132, 4294901760
    %537 = vmatprep.subr.mxu0 %v536
    %v538 = vand.u32 %v131, 4294901760
    %539 = vmatpush1.msra.mxu0 %v538
    %v540 = vand.u32 %v123, 4294901760
    %541 = vmatprep.subr.mxu0 %v540
    %v542 = vand.u32 %v122, 4294901760
    %543 = vmatpush1.msra.mxu0 %v542
    %v544 = vand.u32 %v114, 4294901760
    %545 = vmatprep.subr.mxu0 %v544
    %v546 = vand.u32 %v113, 4294901760
    %547 = vmatpush1.msra.mxu0 %v546
    %v548 = vand.u32 %v46, 4294901760
    %549 = vmatprep.subr.mxu0 %v548
    %v550 = vand.u32 %v45, 4294901760
    %551 = vmatpush1.msra.mxu0 %v550
    %v552 = vand.u32 %v105, 4294901760
    %553 = vmatprep.subr.mxu0 %v552
    %v554 = vand.u32 %v104, 4294901760
    %555 = vmatpush1.msra.mxu0 %v554
    %v556 = vand.u32 %v96, 4294901760
    %557 = vmatprep.subr.mxu0 %v556
    %v558 = vand.u32 %v95, 4294901760
    %559 = vmatpush1.msra.mxu0 %v558
    %v560 = vand.u32 %v87, 4294901760
    %561 = vmatprep.subr.mxu0 %v560
    %v562 = vand.u32 %v86, 4294901760
    %563 = vmatpush1.msra.mxu0 %v562
    %v564 = vand.u32 %v78, 4294901760
    %565 = vmatprep.subr.mxu0 %v564
    %v566 = vand.u32 %v77, 4294901760
    %567 = vmatpush1.msra.mxu0 %v566
    %568 = vmatprep.subr.mxu0 0.0
    %569 = vmatpush2.msra.mxu0 0.0
    %570 = vmatprep.subr.mxu0 0.0
    %571 = vmatpush2.msra.mxu0 0.0
    %572 = vmatprep.subr.mxu0 0.0
    %573 = vmatpush2.msra.mxu0 0.0
    %574 = vmatprep.subr.mxu0 0.0
    %575 = vmatpush2.msra.mxu0 0.0
    %576 = vmatprep.subr.mxu0 0.0
    %577 = vmatpush2.msra.mxu0 0.0
    %578 = vmatprep.subr.mxu0 0.0
    %579 = vmatpush2.msra.mxu0 0.0
    %580 = vmatprep.subr.mxu0 0.0
    %581 = vmatpush2.msra.mxu0 0.0
    %582 = vmatprep.subr.mxu0 0.0
    %583 = vmatpush2.msra.mxu0 0.0
    %584 = vmatprep.subr.mxu0 0.0
    %585 = vmatpush2.msra.mxu0 0.0
    %586 = vmatprep.subr.mxu0 0.0
    %587 = vmatpush2.msra.mxu0 0.0
    %588 = vmatprep.subr.mxu0 0.0
    %589 = vmatpush2.msra.mxu0 0.0
    %590 = vmatprep.subr.mxu0 0.0
    %591 = vmatpush2.msra.mxu0 0.0
    %592 = vmatprep.subr.mxu0 0.0
    %593 = vmatpush2.msra.mxu0 0.0
    %594 = vmatprep.subr.mxu0 0.0
    %595 = vmatpush2.msra.mxu0 0.0
    %596 = vmatprep.subr.mxu0 0.0
    %597 = vmatpush2.msra.mxu0 0.0
    %598 = vmatprep.subr.mxu0 0.0
    %599 = vmatpush2.msra.mxu0 0.0
    %600 = vmatprep.mubr.f32.mxu0 0.0
    %v601 = vand.u32 %v151, 4294901760
    %v602 = vsub.f32 %v151, %v601
    %v603 = vand.u32 %v602, 4294901760
    %604 = vmatmul.mubr.f32.gmra.mxu0 %v603
    %v605 = vpop.f32.mrf.mxu0
    %v606 = vadd.f32 %v514, %v605
    %v607 = vpop.f32.mrf.mxu0
    %v608 = vadd.f32 %v516, %v607
    %609 = vdwg.mxu0
    %610 = vmatprep.subr.mxu0 0.0
    %611 = vmatpush1.msra.mxu0 0.0
    %612 = vmatprep.subr.mxu0 0.0
    %613 = vmatpush1.msra.mxu0 0.0
    %614 = vmatprep.subr.mxu0 0.0
    %615 = vmatpush1.msra.mxu0 0.0
    %616 = vmatprep.subr.mxu0 0.0
    %617 = vmatpush1.msra.mxu0 0.0
    %618 = vmatprep.subr.mxu0 0.0
    %619 = vmatpush1.msra.mxu0 0.0
    %620 = vmatprep.subr.mxu0 0.0
    %621 = vmatpush1.msra.mxu0 0.0
    %622 = vmatprep.subr.mxu0 0.0
    %623 = vmatpush1.msra.mxu0 0.0
    %v624 = vand.u32 %v141, 4294901760
    %v625 = vsub.f32 %v141, %v624
    %v626 = vand.u32 %v625, 4294901760
    %627 = vmatprep.subr.mxu0 %v626
    %v628 = vand.u32 %v140, 4294901760
    %v629 = vsub.f32 %v140, %v628
    %v630 = vand.u32 %v629, 4294901760
    %631 = vmatpush1.msra.mxu0 %v630
    %v632 = vand.u32 %v132, 4294901760
    %v633 = vsub.f32 %v132, %v632
    %v634 = vand.u32 %v633, 4294901760
    %635 = vmatprep.subr.mxu0 %v634
    %v636 = vand.u32 %v131, 4294901760
    %v637 = vsub.f32 %v131, %v636
    %v638 = vand.u32 %v637, 4294901760
    %639 = vmatpush1.msra.mxu0 %v638
    %v640 = vand.u32 %v123, 4294901760
    %v641 = vsub.f32 %v123, %v640
    %v642 = vand.u32 %v641, 4294901760
    %643 = vmatprep.subr.mxu0 %v642
    %v644 = vand.u32 %v122, 4294901760
    %v645 = vsub.f32 %v122, %v644
    %v646 = vand.u32 %v645, 4294901760
    %647 = vmatpush1.msra.mxu0 %v646
    %v648 = vand.u32 %v114, 4294901760
    %v649 = vsub.f32 %v114, %v648
    %v650 = vand.u32 %v649, 4294901760
    %651 = vmatprep.subr.mxu0 %v650
    %v652 = vand.u32 %v113, 4294901760
    %v653 = vsub.f32 %v113, %v652
    %v654 = vand.u32 %v653, 4294901760
    %655 = vmatpush1.msra.mxu0 %v654
    %v656 = vand.u32 %v46, 4294901760
    %v657 = vsub.f32 %v46, %v656
    %v658 = vand.u32 %v657, 4294901760
    %659 = vmatprep.subr.mxu0 %v658
    %v660 = vand.u32 %v45, 4294901760
    %v661 = vsub.f32 %v45, %v660
    %v662 = vand.u32 %v661, 4294901760
    %663 = vmatpush1.msra.mxu0 %v662
    %v664 = vand.u32 %v105, 4294901760
    %v665 = vsub.f32 %v105, %v664
    %v666 = vand.u32 %v665, 4294901760
    %667 = vmatprep.subr.mxu0 %v666
    %v668 = vand.u32 %v104, 4294901760
    %v669 = vsub.f32 %v104, %v668
    %v670 = vand.u32 %v669, 4294901760
    %671 = vmatpush1.msra.mxu0 %v670
    %v672 = vand.u32 %v96, 4294901760
    %v673 = vsub.f32 %v96, %v672
    %v674 = vand.u32 %v673, 4294901760
    %675 = vmatprep.subr.mxu0 %v674
    %v676 = vand.u32 %v95, 4294901760
    %v677 = vsub.f32 %v95, %v676
    %v678 = vand.u32 %v677, 4294901760
    %679 = vmatpush1.msra.mxu0 %v678
    %v680 = vand.u32 %v87, 4294901760
    %v681 = vsub.f32 %v87, %v680
    %v682 = vand.u32 %v681, 4294901760
    %683 = vmatprep.subr.mxu0 %v682
    %v684 = vand.u32 %v86, 4294901760
    %v685 = vsub.f32 %v86, %v684
    %v686 = vand.u32 %v685, 4294901760
    %687 = vmatpush1.msra.mxu0 %v686
    %v688 = vand.u32 %v78, 4294901760
    %v689 = vsub.f32 %v78, %v688
    %v690 = vand.u32 %v689, 4294901760
    %691 = vmatprep.subr.mxu0 %v690
    %v692 = vand.u32 %v77, 4294901760
    %v693 = vsub.f32 %v77, %v692
    %v694 = vand.u32 %v693, 4294901760
    %695 = vmatpush1.msra.mxu0 %v694
    %696 = vmatprep.subr.mxu0 0.0
    %697 = vmatpush2.msra.mxu0 0.0
    %698 = vmatprep.subr.mxu0 0.0
    %699 = vmatpush2.msra.mxu0 0.0
    %700 = vmatprep.subr.mxu0 0.0
    %701 = vmatpush2.msra.mxu0 0.0
    %702 = vmatprep.subr.mxu0 0.0
    %703 = vmatpush2.msra.mxu0 0.0
    %704 = vmatprep.subr.mxu0 0.0
    %705 = vmatpush2.msra.mxu0 0.0
    %706 = vmatprep.subr.mxu0 0.0
    %707 = vmatpush2.msra.mxu0 0.0
    %708 = vmatprep.subr.mxu0 0.0
    %709 = vmatpush2.msra.mxu0 0.0
    %710 = vmatprep.subr.mxu0 0.0
    %711 = vmatpush2.msra.mxu0 0.0
    %712 = vmatprep.subr.mxu0 0.0
    %713 = vmatpush2.msra.mxu0 0.0
    %714 = vmatprep.subr.mxu0 0.0
    %715 = vmatpush2.msra.mxu0 0.0
    %716 = vmatprep.subr.mxu0 0.0
    %717 = vmatpush2.msra.mxu0 0.0
    %718 = vmatprep.subr.mxu0 0.0
    %719 = vmatpush2.msra.mxu0 0.0
    %720 = vmatprep.subr.mxu0 0.0
    %721 = vmatpush2.msra.mxu0 0.0
    %722 = vmatprep.subr.mxu0 0.0
    %723 = vmatpush2.msra.mxu0 0.0
    %724 = vmatprep.subr.mxu0 0.0
    %725 = vmatpush2.msra.mxu0 0.0
    %726 = vmatprep.subr.mxu0 0.0
    %727 = vmatpush2.msra.mxu0 0.0
    %728 = vmatprep.mubr.f32.mxu0 0.0
    %v729 = vand.u32 %v151, 4294901760
    %730 = vmatmul.mubr.f32.gmra.mxu0 %v729
    %v731 = vpop.f32.mrf.mxu0
    %v732 = vadd.f32 %v606, %v731
    %v733 = vpop.f32.mrf.mxu0
    %v734 = vadd.f32 %v608, %v733
    %735 = vdwg.mxu0
    %736 = vmatprep.subr.mxu0 0.0
    %737 = vmatpush1.msra.mxu0 0.0
    %738 = vmatprep.subr.mxu0 0.0
    %739 = vmatpush1.msra.mxu0 0.0
    %740 = vmatprep.subr.mxu0 0.0
    %741 = vmatpush1.msra.mxu0 0.0
    %742 = vmatprep.subr.mxu0 0.0
    %743 = vmatpush1.msra.mxu0 0.0
    %744 = vmatprep.subr.mxu0 0.0
    %745 = vmatpush1.msra.mxu0 0.0
    %746 = vmatprep.subr.mxu0 0.0
    %747 = vmatpush1.msra.mxu0 0.0
    %748 = vmatprep.subr.mxu0 0.0
    %749 = vmatpush1.msra.mxu0 0.0
    %v750 = vand.u32 %v141, 4294901760
    %751 = vmatprep.subr.mxu0 %v750
    %v752 = vand.u32 %v140, 4294901760
    %753 = vmatpush1.msra.mxu0 %v752
    %v754 = vand.u32 %v132, 4294901760
    %755 = vmatprep.subr.mxu0 %v754
    %v756 = vand.u32 %v131, 4294901760
    %757 = vmatpush1.msra.mxu0 %v756
    %v758 = vand.u32 %v123, 4294901760
    %759 = vmatprep.subr.mxu0 %v758
    %v760 = vand.u32 %v122, 4294901760
    %761 = vmatpush1.msra.mxu0 %v760
    %v762 = vand.u32 %v114, 4294901760
    %763 = vmatprep.subr.mxu0 %v762
    %v764 = vand.u32 %v113, 4294901760
    %765 = vmatpush1.msra.mxu0 %v764
    %v766 = vand.u32 %v46, 4294901760
    %767 = vmatprep.subr.mxu0 %v766
    %v768 = vand.u32 %v45, 4294901760
    %769 = vmatpush1.msra.mxu0 %v768
    %v770 = vand.u32 %v105, 4294901760
    %771 = vmatprep.subr.mxu0 %v770
    %v772 = vand.u32 %v104, 4294901760
    %773 = vmatpush1.msra.mxu0 %v772
    %v774 = vand.u32 %v96, 4294901760
    %775 = vmatprep.subr.mxu0 %v774
    %v776 = vand.u32 %v95, 4294901760
    %777 = vmatpush1.msra.mxu0 %v776
    %v778 = vand.u32 %v87, 4294901760
    %779 = vmatprep.subr.mxu0 %v778
    %v780 = vand.u32 %v86, 4294901760
    %781 = vmatpush1.msra.mxu0 %v780
    %v782 = vand.u32 %v78, 4294901760
    %783 = vmatprep.subr.mxu0 %v782
    %v784 = vand.u32 %v77, 4294901760
    %785 = vmatpush1.msra.mxu0 %v784
    %786 = vmatprep.subr.mxu0 0.0
    %787 = vmatpush2.msra.mxu0 0.0
    %788 = vmatprep.subr.mxu0 0.0
    %789 = vmatpush2.msra.mxu0 0.0
    %790 = vmatprep.subr.mxu0 0.0
    %791 = vmatpush2.msra.mxu0 0.0
    %792 = vmatprep.subr.mxu0 0.0
    %793 = vmatpush2.msra.mxu0 0.0
    %794 = vmatprep.subr.mxu0 0.0
    %795 = vmatpush2.msra.mxu0 0.0
    %796 = vmatprep.subr.mxu0 0.0
    %797 = vmatpush2.msra.mxu0 0.0
    %798 = vmatprep.subr.mxu0 0.0
    %799 = vmatpush2.msra.mxu0 0.0
    %800 = vmatprep.subr.mxu0 0.0
    %801 = vmatpush2.msra.mxu0 0.0
    %802 = vmatprep.subr.mxu0 0.0
    %803 = vmatpush2.msra.mxu0 0.0
    %804 = vmatprep.subr.mxu0 0.0
    %805 = vmatpush2.msra.mxu0 0.0
    %806 = vmatprep.subr.mxu0 0.0
    %807 = vmatpush2.msra.mxu0 0.0
    %808 = vmatprep.subr.mxu0 0.0
    %809 = vmatpush2.msra.mxu0 0.0
    %810 = vmatprep.subr.mxu0 0.0
    %811 = vmatpush2.msra.mxu0 0.0
    %812 = vmatprep.subr.mxu0 0.0
    %813 = vmatpush2.msra.mxu0 0.0
    %814 = vmatprep.subr.mxu0 0.0
    %815 = vmatpush2.msra.mxu0 0.0
    %816 = vmatprep.subr.mxu0 0.0
    %817 = vmatpush2.msra.mxu0 0.0
    %818 = vmatprep.mubr.f32.mxu0 0.0
    %v819 = vand.u32 %v151, 4294901760
    %820 = vmatmul.mubr.f32.gmra.mxu0 %v819
    %v821 = vpop.f32.mrf.mxu0
    %v822 = vadd.f32 %v732, %v821
    %v823 = vpop.f32.mrf.mxu0
    %v824 = vadd.f32 %v734, %v823
    %825 = vdwg.mxu0
    %v826 = vmax.f32 %v822, 0.0
    %v827 = vmax.f32 %v824, 0.0
    %828 = vrot.lane.b32.xlu0 %v826, 17
    %v829 = vpop.permute.xlu0 %828
    %830 = vrot.lane.b32.xlu0 %v827, 17
    %v831 = vpop.permute.xlu0 %830
    %v832 = vsel %vm74, %v829, %v831
    %v833 = vsel %vm74, %v831, %v829
    %v834 = vsel %vm58, %v833, 0.0
    %v835 = vsel %vm59, %v832, 0.0
    %836 = vrot.lane.b32.xlu0 %v826, 16
    %v837 = vpop.permute.xlu0 %836
    %838 = vrot.lane.b32.xlu0 %v827, 16
    %v839 = vpop.permute.xlu0 %838
    %v840 = vsel %vm83, %v837, %v839
    %v841 = vsel %vm83, %v839, %v837
    %v842 = vsel %vm54, %v841, 0.0
    %v843 = vsel %vm55, %v840, 0.0
    %844 = vrot.lane.b32.xlu0 %v826, 15
    %v845 = vpop.permute.xlu0 %844
    %846 = vrot.lane.b32.xlu0 %v827, 15
    %v847 = vpop.permute.xlu0 %846
    %v848 = vsel %vm92, %v845, %v847
    %v849 = vsel %vm92, %v847, %v845
    %v850 = vsel %vm62, %v849, 0.0
    %v851 = vsel %vm63, %v848, 0.0
    %852 = vrot.lane.b32.xlu0 %v826, 1
    %v853 = vpop.permute.xlu0 %852
    %854 = vrot.lane.b32.xlu0 %v827, 1
    %v855 = vpop.permute.xlu0 %854
    %v856 = vsel %vm101, %v853, %v855
    %v857 = vsel %vm101, %v855, %v853
    %v858 = vsel %vm56, %v857, 0.0
    %v859 = vsel %vm57, %v856, 0.0
    %860 = vrot.lane.b32.xlu0 %v826, 127
    %v861 = vpop.permute.xlu0 %860
    %862 = vrot.lane.b32.xlu0 %v827, 127
    %v863 = vpop.permute.xlu0 %862
    %v864 = vsel %vm110, %v861, %v863
    %v865 = vsel %vm110, %v863, %v861
    %v866 = vsel %vm60, %v864, 0.0
    %v867 = vsel %vm61, %v865, 0.0
    %868 = vrot.lane.b32.xlu0 %v826, 113
    %v869 = vpop.permute.xlu0 %868
    %870 = vrot.lane.b32.xlu0 %v827, 113
    %v871 = vpop.permute.xlu0 %870
    %v872 = vsel %vm119, %v869, %v871
    %v873 = vsel %vm119, %v871, %v869
    %v874 = vsel %vm66, %v872, 0.0
    %v875 = vsel %vm67, %v873, 0.0
    %876 = vrot.lane.b32.xlu0 %v826, 112
    %v877 = vpop.permute.xlu0 %876
    %878 = vrot.lane.b32.xlu0 %v827, 112
    %v879 = vpop.permute.xlu0 %878
    %v880 = vsel %vm128, %v877, %v879
    %v881 = vsel %vm128, %v879, %v877
    %v882 = vsel %vm64, %v880, 0.0
    %v883 = vsel %vm65, %v881, 0.0
    %884 = vrot.lane.b32.xlu0 %v826, 111
    %v885 = vpop.permute.xlu0 %884
    %886 = vrot.lane.b32.xlu0 %v827, 111
    %v887 = vpop.permute.xlu0 %886
    %v888 = vsel %vm137, %v885, %v887
    %v889 = vsel %vm137, %v887, %v885
    %v890 = vsel %vm68, %v888, 0.0
    %v891 = vsel %vm69, %v889, 0.0
    %v892 = vld [vmem:[#allocation5] sm:$0xff]
    %v893 = vld [vmem:[%s4] sm:$0xff]
    %895 = vset.pattern.permute.xlu0 0
    %896 = vperm.xlu0 %895, %v893
    %v897 = vpop.permute.xlu0 %896
    %v900 = vsel %vm149, %v892, 0
    %902 = vmatprep.subr.mxu0 0.0
    %903 = vmatpush1.msra.mxu0 0.0
    %904 = vmatprep.subr.mxu0 0.0
    %905 = vmatpush1.msra.mxu0 0.0
    %906 = vmatprep.subr.mxu0 0.0
    %907 = vmatpush1.msra.mxu0 0.0
    %908 = vmatprep.subr.mxu0 0.0
    %909 = vmatpush1.msra.mxu0 0.0
    %910 = vmatprep.subr.mxu0 0.0
    %911 = vmatpush1.msra.mxu0 0.0
    %912 = vmatprep.subr.mxu0 0.0
    %913 = vmatpush1.msra.mxu0 0.0
    %914 = vmatprep.subr.mxu0 0.0
    %915 = vmatpush1.msra.mxu0 0.0
    %v916 = vand.u32 %v891, 4294901760
    %917 = vmatprep.subr.mxu0 %v916
    %v918 = vand.u32 %v890, 4294901760
    %919 = vmatpush1.msra.mxu0 %v918
    %v920 = vand.u32 %v883, 4294901760
    %921 = vmatprep.subr.mxu0 %v920
    %v922 = vand.u32 %v882, 4294901760
    %923 = vmatpush1.msra.mxu0 %v922
    %v924 = vand.u32 %v875, 4294901760
    %925 = vmatprep.subr.mxu0 %v924
    %v926 = vand.u32 %v874, 4294901760
    %927 = vmatpush1.msra.mxu0 %v926
    %v928 = vand.u32 %v867, 4294901760
    %929 = vmatprep.subr.mxu0 %v928
    %v930 = vand.u32 %v866, 4294901760
    %931 = vmatpush1.msra.mxu0 %v930
    %v932 = vand.u32 %v827, 4294901760
    %933 = vmatprep.subr.mxu0 %v932
    %v934 = vand.u32 %v826, 4294901760
    %935 = vmatpush1.msra.mxu0 %v934
    %v936 = vand.u32 %v859, 4294901760
    %937 = vmatprep.subr.mxu0 %v936
    %v938 = vand.u32 %v858, 4294901760
    %939 = vmatpush1.msra.mxu0 %v938
    %v940 = vand.u32 %v851, 4294901760
    %941 = vmatprep.subr.mxu0 %v940
    %v942 = vand.u32 %v850, 4294901760
    %943 = vmatpush1.msra.mxu0 %v942
    %v944 = vand.u32 %v843, 4294901760
    %945 = vmatprep.subr.mxu0 %v944
    %v946 = vand.u32 %v842, 4294901760
    %947 = vmatpush1.msra.mxu0 %v946
    %v948 = vand.u32 %v835, 4294901760
    %949 = vmatprep.subr.mxu0 %v948
    %v950 = vand.u32 %v834, 4294901760
    %951 = vmatpush1.msra.mxu0 %v950
    %952 = vmatprep.subr.mxu0 0.0
    %953 = vmatpush2.msra.mxu0 0.0
    %954 = vmatprep.subr.mxu0 0.0
    %955 = vmatpush2.msra.mxu0 0.0
    %956 = vmatprep.subr.mxu0 0.0
    %957 = vmatpush2.msra.mxu0 0.0
    %958 = vmatprep.subr.mxu0 0.0
    %959 = vmatpush2.msra.mxu0 0.0
    %960 = vmatprep.subr.mxu0 0.0
    %961 = vmatpush2.msra.mxu0 0.0
    %962 = vmatprep.subr.mxu0 0.0
    %963 = vmatpush2.msra.mxu0 0.0
    %964 = vmatprep.subr.mxu0 0.0
    %965 = vmatpush2.msra.mxu0 0.0
    %966 = vmatprep.subr.mxu0 0.0
    %967 = vmatpush2.msra.mxu0 0.0
    %968 = vmatprep.subr.mxu0 0.0
    %969 = vmatpush2.msra.mxu0 0.0
    %970 = vmatprep.subr.mxu0 0.0
    %971 = vmatpush2.msra.mxu0 0.0
    %972 = vmatprep.subr.mxu0 0.0
    %973 = vmatpush2.msra.mxu0 0.0
    %974 = vmatprep.subr.mxu0 0.0
    %975 = vmatpush2.msra.mxu0 0.0
    %976 = vmatprep.subr.mxu0 0.0
    %977 = vmatpush2.msra.mxu0 0.0
    %978 = vmatprep.subr.mxu0 0.0
    %979 = vmatpush2.msra.mxu0 0.0
    %980 = vmatprep.subr.mxu0 0.0
    %981 = vmatpush2.msra.mxu0 0.0
    %982 = vmatprep.subr.mxu0 0.0
    %983 = vmatpush2.msra.mxu0 0.0
    %984 = vmatprep.mubr.f32.mxu0 0.0
    %v985 = vand.u32 %v900, 4294901760
    %v986 = vsub.f32 %v900, %v985
    %v987 = vand.u32 %v986, 4294901760
    %v988 = vsub.f32 %v986, %v987
    %v989 = vand.u32 %v988, 4294901760
    %990 = vmatmul.mubr.f32.gmra.mxu0 %v989
    %v991 = vpop.f32.mrf.mxu0
    %v992 = vadd.f32 %v897, %v991
    %v993 = vpop.f32.mrf.mxu0
    %v994 = vadd.f32 %v897, %v993
    %995 = vdwg.mxu0
    %996 = vmatprep.subr.mxu0 0.0
    %997 = vmatpush1.msra.mxu0 0.0
    %998 = vmatprep.subr.mxu0 0.0
    %999 = vmatpush1.msra.mxu0 0.0
    %1000 = vmatprep.subr.mxu0 0.0
    %1001 = vmatpush1.msra.mxu0 0.0
    %1002 = vmatprep.subr.mxu0 0.0
    %1003 = vmatpush1.msra.mxu0 0.0
    %1004 = vmatprep.subr.mxu0 0.0
    %1005 = vmatpush1.msra.mxu0 0.0
    %1006 = vmatprep.subr.mxu0 0.0
    %1007 = vmatpush1.msra.mxu0 0.0
    %1008 = vmatprep.subr.mxu0 0.0
    %1009 = vmatpush1.msra.mxu0 0.0
    %v1010 = vand.u32 %v891, 4294901760
    %v1011 = vsub.f32 %v891, %v1010
    %v1012 = vand.u32 %v1011, 4294901760
    %v1013 = vsub.f32 %v1011, %v1012
    %v1014 = vand.u32 %v1013, 4294901760
    %1015 = vmatprep.subr.mxu0 %v1014
    %v1016 = vand.u32 %v890, 4294901760
    %v1017 = vsub.f32 %v890, %v1016
    %v1018 = vand.u32 %v1017, 4294901760
    %v1019 = vsub.f32 %v1017, %v1018
    %v1020 = vand.u32 %v1019, 4294901760
    %1021 = vmatpush1.msra.mxu0 %v1020
    %v1022 = vand.u32 %v883, 4294901760
    %v1023 = vsub.f32 %v883, %v1022
    %v1024 = vand.u32 %v1023, 4294901760
    %v1025 = vsub.f32 %v1023, %v1024
    %v1026 = vand.u32 %v1025, 4294901760
    %1027 = vmatprep.subr.mxu0 %v1026
    %v1028 = vand.u32 %v882, 4294901760
    %v1029 = vsub.f32 %v882, %v1028
    %v1030 = vand.u32 %v1029, 4294901760
    %v1031 = vsub.f32 %v1029, %v1030
    %v1032 = vand.u32 %v1031, 4294901760
    %1033 = vmatpush1.msra.mxu0 %v1032
    %v1034 = vand.u32 %v875, 4294901760
    %v1035 = vsub.f32 %v875, %v1034
    %v1036 = vand.u32 %v1035, 4294901760
    %v1037 = vsub.f32 %v1035, %v1036
    %v1038 = vand.u32 %v1037, 4294901760
    %1039 = vmatprep.subr.mxu0 %v1038
    %v1040 = vand.u32 %v874, 4294901760
    %v1041 = vsub.f32 %v874, %v1040
    %v1042 = vand.u32 %v1041, 4294901760
    %v1043 = vsub.f32 %v1041, %v1042
    %v1044 = vand.u32 %v1043, 4294901760
    %1045 = vmatpush1.msra.mxu0 %v1044
    %v1046 = vand.u32 %v867, 4294901760
    %v1047 = vsub.f32 %v867, %v1046
    %v1048 = vand.u32 %v1047, 4294901760
    %v1049 = vsub.f32 %v1047, %v1048
    %v1050 = vand.u32 %v1049, 4294901760
    %1051 = vmatprep.subr.mxu0 %v1050
    %v1052 = vand.u32 %v866, 4294901760
    %v1053 = vsub.f32 %v866, %v1052
    %v1054 = vand.u32 %v1053, 4294901760
    %v1055 = vsub.f32 %v1053, %v1054
    %v1056 = vand.u32 %v1055, 4294901760
    %1057 = vmatpush1.msra.mxu0 %v1056
    %v1058 = vand.u32 %v827, 4294901760
    %v1059 = vsub.f32 %v827, %v1058
    %v1060 = vand.u32 %v1059, 4294901760
    %v1061 = vsub.f32 %v1059, %v1060
    %v1062 = vand.u32 %v1061, 4294901760
    %1063 = vmatprep.subr.mxu0 %v1062
    %v1064 = vand.u32 %v826, 4294901760
    %v1065 = vsub.f32 %v826, %v1064
    %v1066 = vand.u32 %v1065, 4294901760
    %v1067 = vsub.f32 %v1065, %v1066
    %v1068 = vand.u32 %v1067, 4294901760
    %1069 = vmatpush1.msra.mxu0 %v1068
    %v1070 = vand.u32 %v859, 4294901760
    %v1071 = vsub.f32 %v859, %v1070
    %v1072 = vand.u32 %v1071, 4294901760
    %v1073 = vsub.f32 %v1071, %v1072
    %v1074 = vand.u32 %v1073, 4294901760
    %1075 = vmatprep.subr.mxu0 %v1074
    %v1076 = vand.u32 %v858, 4294901760
    %v1077 = vsub.f32 %v858, %v1076
    %v1078 = vand.u32 %v1077, 4294901760
    %v1079 = vsub.f32 %v1077, %v1078
    %v1080 = vand.u32 %v1079, 4294901760
    %1081 = vmatpush1.msra.mxu0 %v1080
    %v1082 = vand.u32 %v851, 4294901760
    %v1083 = vsub.f32 %v851, %v1082
    %v1084 = vand.u32 %v1083, 4294901760
    %v1085 = vsub.f32 %v1083, %v1084
    %v1086 = vand.u32 %v1085, 4294901760
    %1087 = vmatprep.subr.mxu0 %v1086
    %v1088 = vand.u32 %v850, 4294901760
    %v1089 = vsub.f32 %v850, %v1088
    %v1090 = vand.u32 %v1089, 4294901760
    %v1091 = vsub.f32 %v1089, %v1090
    %v1092 = vand.u32 %v1091, 4294901760
    %1093 = vmatpush1.msra.mxu0 %v1092
    %v1094 = vand.u32 %v843, 4294901760
    %v1095 = vsub.f32 %v843, %v1094
    %v1096 = vand.u32 %v1095, 4294901760
    %v1097 = vsub.f32 %v1095, %v1096
    %v1098 = vand.u32 %v1097, 4294901760
    %1099 = vmatprep.subr.mxu0 %v1098
    %v1100 = vand.u32 %v842, 4294901760
    %v1101 = vsub.f32 %v842, %v1100
    %v1102 = vand.u32 %v1101, 4294901760
    %v1103 = vsub.f32 %v1101, %v1102
    %v1104 = vand.u32 %v1103, 4294901760
    %1105 = vmatpush1.msra.mxu0 %v1104
    %v1106 = vand.u32 %v835, 4294901760
    %v1107 = vsub.f32 %v835, %v1106
    %v1108 = vand.u32 %v1107, 4294901760
    %v1109 = vsub.f32 %v1107, %v1108
    %v1110 = vand.u32 %v1109, 4294901760
    %1111 = vmatprep.subr.mxu0 %v1110
    %v1112 = vand.u32 %v834, 4294901760
    %v1113 = vsub.f32 %v834, %v1112
    %v1114 = vand.u32 %v1113, 4294901760
    %v1115 = vsub.f32 %v1113, %v1114
    %v1116 = vand.u32 %v1115, 4294901760
    %1117 = vmatpush1.msra.mxu0 %v1116
    %1118 = vmatprep.subr.mxu0 0.0
    %1119 = vmatpush2.msra.mxu0 0.0
    %1120 = vmatprep.subr.mxu0 0.0
    %1121 = vmatpush2.msra.mxu0 0.0
    %1122 = vmatprep.subr.mxu0 0.0
    %1123 = vmatpush2.msra.mxu0 0.0
    %1124 = vmatprep.subr.mxu0 0.0
    %1125 = vmatpush2.msra.mxu0 0.0
    %1126 = vmatprep.subr.mxu0 0.0
    %1127 = vmatpush2.msra.mxu0 0.0
    %1128 = vmatprep.subr.mxu0 0.0
    %1129 = vmatpush2.msra.mxu0 0.0
    %1130 = vmatprep.subr.mxu0 0.0
    %1131 = vmatpush2.msra.mxu0 0.0
    %1132 = vmatprep.subr.mxu0 0.0
    %1133 = vmatpush2.msra.mxu0 0.0
    %1134 = vmatprep.subr.mxu0 0.0
    %1135 = vmatpush2.msra.mxu0 0.0
    %1136 = vmatprep.subr.mxu0 0.0
    %1137 = vmatpush2.msra.mxu0 0.0
    %1138 = vmatprep.subr.mxu0 0.0
    %1139 = vmatpush2.msra.mxu0 0.0
    %1140 = vmatprep.subr.mxu0 0.0
    %1141 = vmatpush2.msra.mxu0 0.0
    %1142 = vmatprep.subr.mxu0 0.0
    %1143 = vmatpush2.msra.mxu0 0.0
    %1144 = vmatprep.subr.mxu0 0.0
    %1145 = vmatpush2.msra.mxu0 0.0
    %1146 = vmatprep.subr.mxu0 0.0
    %1147 = vmatpush2.msra.mxu0 0.0
    %1148 = vmatprep.subr.mxu0 0.0
    %1149 = vmatpush2.msra.mxu0 0.0
    %1150 = vmatprep.mubr.f32.mxu0 0.0
    %v1151 = vand.u32 %v900, 4294901760
    %1152 = vmatmul.mubr.f32.gmra.mxu0 %v1151
    %v1153 = vpop.f32.mrf.mxu0
    %v1154 = vadd.f32 %v992, %v1153
    %v1155 = vpop.f32.mrf.mxu0
    %v1156 = vadd.f32 %v994, %v1155
    %1157 = vdwg.mxu0
    %1158 = vmatprep.subr.mxu0 0.0
    %1159 = vmatpush1.msra.mxu0 0.0
    %1160 = vmatprep.subr.mxu0 0.0
    %1161 = vmatpush1.msra.mxu0 0.0
    %1162 = vmatprep.subr.mxu0 0.0
    %1163 = vmatpush1.msra.mxu0 0.0
    %1164 = vmatprep.subr.mxu0 0.0
    %1165 = vmatpush1.msra.mxu0 0.0
    %1166 = vmatprep.subr.mxu0 0.0
    %1167 = vmatpush1.msra.mxu0 0.0
    %1168 = vmatprep.subr.mxu0 0.0
    %1169 = vmatpush1.msra.mxu0 0.0
    %1170 = vmatprep.subr.mxu0 0.0
    %1171 = vmatpush1.msra.mxu0 0.0
    %v1172 = vand.u32 %v891, 4294901760
    %v1173 = vsub.f32 %v891, %v1172
    %1174 = vmatprep.subr.mxu0 %v1173
    %v1175 = vand.u32 %v890, 4294901760
    %v1176 = vsub.f32 %v890, %v1175
    %1177 = vmatpush1.msra.mxu0 %v1176
    %v1178 = vand.u32 %v883, 4294901760
    %v1179 = vsub.f32 %v883, %v1178
    %1180 = vmatprep.subr.mxu0 %v1179
    %v1181 = vand.u32 %v882, 4294901760
    %v1182 = vsub.f32 %v882, %v1181
    %1183 = vmatpush1.msra.mxu0 %v1182
    %v1184 = vand.u32 %v875, 4294901760
    %v1185 = vsub.f32 %v875, %v1184
    %1186 = vmatprep.subr.mxu0 %v1185
    %v1187 = vand.u32 %v874, 4294901760
    %v1188 = vsub.f32 %v874, %v1187
    %1189 = vmatpush1.msra.mxu0 %v1188
    %v1190 = vand.u32 %v867, 4294901760
    %v1191 = vsub.f32 %v867, %v1190
    %1192 = vmatprep.subr.mxu0 %v1191
    %v1193 = vand.u32 %v866, 4294901760
    %v1194 = vsub.f32 %v866, %v1193
    %1195 = vmatpush1.msra.mxu0 %v1194
    %v1196 = vand.u32 %v827, 4294901760
    %v1197 = vsub.f32 %v827, %v1196
    %1198 = vmatprep.subr.mxu0 %v1197
    %v1199 = vand.u32 %v826, 4294901760
    %v1200 = vsub.f32 %v826, %v1199
    %1201 = vmatpush1.msra.mxu0 %v1200
    %v1202 = vand.u32 %v859, 4294901760
    %v1203 = vsub.f32 %v859, %v1202
    %1204 = vmatprep.subr.mxu0 %v1203
    %v1205 = vand.u32 %v858, 4294901760
    %v1206 = vsub.f32 %v858, %v1205
    %1207 = vmatpush1.msra.mxu0 %v1206
    %v1208 = vand.u32 %v851, 4294901760
    %v1209 = vsub.f32 %v851, %v1208
    %1210 = vmatprep.subr.mxu0 %v1209
    %v1211 = vand.u32 %v850, 4294901760
    %v1212 = vsub.f32 %v850, %v1211
    %1213 = vmatpush1.msra.mxu0 %v1212
    %v1214 = vand.u32 %v843, 4294901760
    %v1215 = vsub.f32 %v843, %v1214
    %1216 = vmatprep.subr.mxu0 %v1215
    %v1217 = vand.u32 %v842, 4294901760
    %v1218 = vsub.f32 %v842, %v1217
    %1219 = vmatpush1.msra.mxu0 %v1218
    %v1220 = vand.u32 %v835, 4294901760
    %v1221 = vsub.f32 %v835, %v1220
    %1222 = vmatprep.subr.mxu0 %v1221
    %v1223 = vand.u32 %v834, 4294901760
    %v1224 = vsub.f32 %v834, %v1223
    %1225 = vmatpush1.msra.mxu0 %v1224
    %1226 = vmatprep.subr.mxu0 0.0
    %1227 = vmatpush2.msra.mxu0 0.0
    %1228 = vmatprep.subr.mxu0 0.0
    %1229 = vmatpush2.msra.mxu0 0.0
    %1230 = vmatprep.subr.mxu0 0.0
    %1231 = vmatpush2.msra.mxu0 0.0
    %1232 = vmatprep.subr.mxu0 0.0
    %1233 = vmatpush2.msra.mxu0 0.0
    %1234 = vmatprep.subr.mxu0 0.0
    %1235 = vmatpush2.msra.mxu0 0.0
    %1236 = vmatprep.subr.mxu0 0.0
    %1237 = vmatpush2.msra.mxu0 0.0
    %1238 = vmatprep.subr.mxu0 0.0
    %1239 = vmatpush2.msra.mxu0 0.0
    %1240 = vmatprep.subr.mxu0 0.0
    %1241 = vmatpush2.msra.mxu0 0.0
    %1242 = vmatprep.subr.mxu0 0.0
    %1243 = vmatpush2.msra.mxu0 0.0
    %1244 = vmatprep.subr.mxu0 0.0
    %1245 = vmatpush2.msra.mxu0 0.0
    %1246 = vmatprep.subr.mxu0 0.0
    %1247 = vmatpush2.msra.mxu0 0.0
    %1248 = vmatprep.subr.mxu0 0.0
    %1249 = vmatpush2.msra.mxu0 0.0
    %1250 = vmatprep.subr.mxu0 0.0
    %1251 = vmatpush2.msra.mxu0 0.0
    %1252 = vmatprep.subr.mxu0 0.0
    %1253 = vmatpush2.msra.mxu0 0.0
    %1254 = vmatprep.subr.mxu0 0.0
    %1255 = vmatpush2.msra.mxu0 0.0
    %1256 = vmatprep.subr.mxu0 0.0
    %1257 = vmatpush2.msra.mxu0 0.0
    %1258 = vmatprep.mubr.f32.mxu0 0.0
    %v1259 = vand.u32 %v900, 4294901760
    %v1260 = vsub.f32 %v900, %v1259
    %1261 = vmatmul.mubr.f32.gmra.mxu0 %v1260
    %v1262 = vpop.f32.mrf.mxu0
    %v1263 = vadd.f32 %v1154, %v1262
    %v1264 = vpop.f32.mrf.mxu0
    %v1265 = vadd.f32 %v1156, %v1264
    %1266 = vdwg.mxu0
    %1267 = vmatprep.subr.mxu0 0.0
    %1268 = vmatpush1.msra.mxu0 0.0
    %1269 = vmatprep.subr.mxu0 0.0
    %1270 = vmatpush1.msra.mxu0 0.0
    %1271 = vmatprep.subr.mxu0 0.0
    %1272 = vmatpush1.msra.mxu0 0.0
    %1273 = vmatprep.subr.mxu0 0.0
    %1274 = vmatpush1.msra.mxu0 0.0
    %1275 = vmatprep.subr.mxu0 0.0
    %1276 = vmatpush1.msra.mxu0 0.0
    %1277 = vmatprep.subr.mxu0 0.0
    %1278 = vmatpush1.msra.mxu0 0.0
    %1279 = vmatprep.subr.mxu0 0.0
    %1280 = vmatpush1.msra.mxu0 0.0
    %v1281 = vand.u32 %v891, 4294901760
    %1282 = vmatprep.subr.mxu0 %v1281
    %v1283 = vand.u32 %v890, 4294901760
    %1284 = vmatpush1.msra.mxu0 %v1283
    %v1285 = vand.u32 %v883, 4294901760
    %1286 = vmatprep.subr.mxu0 %v1285
    %v1287 = vand.u32 %v882, 4294901760
    %1288 = vmatpush1.msra.mxu0 %v1287
    %v1289 = vand.u32 %v875, 4294901760
    %1290 = vmatprep.subr.mxu0 %v1289
    %v1291 = vand.u32 %v874, 4294901760
    %1292 = vmatpush1.msra.mxu0 %v1291
    %v1293 = vand.u32 %v867, 4294901760
    %1294 = vmatprep.subr.mxu0 %v1293
    %v1295 = vand.u32 %v866, 4294901760
    %1296 = vmatpush1.msra.mxu0 %v1295
    %v1297 = vand.u32 %v827, 4294901760
    %1298 = vmatprep.subr.mxu0 %v1297
    %v1299 = vand.u32 %v826, 4294901760
    %1300 = vmatpush1.msra.mxu0 %v1299
    %v1301 = vand.u32 %v859, 4294901760
    %1302 = vmatprep.subr.mxu0 %v1301
    %v1303 = vand.u32 %v858, 4294901760
    %1304 = vmatpush1.msra.mxu0 %v1303
    %v1305 = vand.u32 %v851, 4294901760
    %1306 = vmatprep.subr.mxu0 %v1305
    %v1307 = vand.u32 %v850, 4294901760
    %1308 = vmatpush1.msra.mxu0 %v1307
    %v1309 = vand.u32 %v843, 4294901760
    %1310 = vmatprep.subr.mxu0 %v1309
    %v1311 = vand.u32 %v842, 4294901760
    %1312 = vmatpush1.msra.mxu0 %v1311
    %v1313 = vand.u32 %v835, 4294901760
    %1314 = vmatprep.subr.mxu0 %v1313
    %v1315 = vand.u32 %v834, 4294901760
    %1316 = vmatpush1.msra.mxu0 %v1315
    %1317 = vmatprep.subr.mxu0 0.0
    %1318 = vmatpush2.msra.mxu0 0.0
    %1319 = vmatprep.subr.mxu0 0.0
    %1320 = vmatpush2.msra.mxu0 0.0
    %1321 = vmatprep.subr.mxu0 0.0
    %1322 = vmatpush2.msra.mxu0 0.0
    %1323 = vmatprep.subr.mxu0 0.0
    %1324 = vmatpush2.msra.mxu0 0.0
    %1325 = vmatprep.subr.mxu0 0.0
    %1326 = vmatpush2.msra.mxu0 0.0
    %1327 = vmatprep.subr.mxu0 0.0
    %1328 = vmatpush2.msra.mxu0 0.0
    %1329 = vmatprep.subr.mxu0 0.0
    %1330 = vmatpush2.msra.mxu0 0.0
    %1331 = vmatprep.subr.mxu0 0.0
    %1332 = vmatpush2.msra.mxu0 0.0
    %1333 = vmatprep.subr.mxu0 0.0
    %1334 = vmatpush2.msra.mxu0 0.0
    %1335 = vmatprep.subr.mxu0 0.0
    %1336 = vmatpush2.msra.mxu0 0.0
    %1337 = vmatprep.subr.mxu0 0.0
    %1338 = vmatpush2.msra.mxu0 0.0
    %1339 = vmatprep.subr.mxu0 0.0
    %1340 = vmatpush2.msra.mxu0 0.0
    %1341 = vmatprep.subr.mxu0 0.0
    %1342 = vmatpush2.msra.mxu0 0.0
    %1343 = vmatprep.subr.mxu0 0.0
    %1344 = vmatpush2.msra.mxu0 0.0
    %1345 = vmatprep.subr.mxu0 0.0
    %1346 = vmatpush2.msra.mxu0 0.0
    %1347 = vmatprep.subr.mxu0 0.0
    %1348 = vmatpush2.msra.mxu0 0.0
    %1349 = vmatprep.mubr.f32.mxu0 0.0
    %v1350 = vand.u32 %v900, 4294901760
    %v1351 = vsub.f32 %v900, %v1350
    %v1352 = vand.u32 %v1351, 4294901760
    %1353 = vmatmul.mubr.f32.gmra.mxu0 %v1352
    %v1354 = vpop.f32.mrf.mxu0
    %v1355 = vadd.f32 %v1263, %v1354
    %v1356 = vpop.f32.mrf.mxu0
    %v1357 = vadd.f32 %v1265, %v1356
    %1358 = vdwg.mxu0
    %1359 = vmatprep.subr.mxu0 0.0
    %1360 = vmatpush1.msra.mxu0 0.0
    %1361 = vmatprep.subr.mxu0 0.0
    %1362 = vmatpush1.msra.mxu0 0.0
    %1363 = vmatprep.subr.mxu0 0.0
    %1364 = vmatpush1.msra.mxu0 0.0
    %1365 = vmatprep.subr.mxu0 0.0
    %1366 = vmatpush1.msra.mxu0 0.0
    %1367 = vmatprep.subr.mxu0 0.0
    %1368 = vmatpush1.msra.mxu0 0.0
    %1369 = vmatprep.subr.mxu0 0.0
    %1370 = vmatpush1.msra.mxu0 0.0
    %1371 = vmatprep.subr.mxu0 0.0
    %1372 = vmatpush1.msra.mxu0 0.0
    %v1373 = vand.u32 %v891, 4294901760
    %v1374 = vsub.f32 %v891, %v1373
    %v1375 = vand.u32 %v1374, 4294901760
    %1376 = vmatprep.subr.mxu0 %v1375
    %v1377 = vand.u32 %v890, 4294901760
    %v1378 = vsub.f32 %v890, %v1377
    %v1379 = vand.u32 %v1378, 4294901760
    %1380 = vmatpush1.msra.mxu0 %v1379
    %v1381 = vand.u32 %v883, 4294901760
    %v1382 = vsub.f32 %v883, %v1381
    %v1383 = vand.u32 %v1382, 4294901760
    %1384 = vmatprep.subr.mxu0 %v1383
    %v1385 = vand.u32 %v882, 4294901760
    %v1386 = vsub.f32 %v882, %v1385
    %v1387 = vand.u32 %v1386, 4294901760
    %1388 = vmatpush1.msra.mxu0 %v1387
    %v1389 = vand.u32 %v875, 4294901760
    %v1390 = vsub.f32 %v875, %v1389
    %v1391 = vand.u32 %v1390, 4294901760
    %1392 = vmatprep.subr.mxu0 %v1391
    %v1393 = vand.u32 %v874, 4294901760
    %v1394 = vsub.f32 %v874, %v1393
    %v1395 = vand.u32 %v1394, 4294901760
    %1396 = vmatpush1.msra.mxu0 %v1395
    %v1397 = vand.u32 %v867, 4294901760
    %v1398 = vsub.f32 %v867, %v1397
    %v1399 = vand.u32 %v1398, 4294901760
    %1400 = vmatprep.subr.mxu0 %v1399
    %v1401 = vand.u32 %v866, 4294901760
    %v1402 = vsub.f32 %v866, %v1401
    %v1403 = vand.u32 %v1402, 4294901760
    %1404 = vmatpush1.msra.mxu0 %v1403
    %v1405 = vand.u32 %v827, 4294901760
    %v1406 = vsub.f32 %v827, %v1405
    %v1407 = vand.u32 %v1406, 4294901760
    %1408 = vmatprep.subr.mxu0 %v1407
    %v1409 = vand.u32 %v826, 4294901760
    %v1410 = vsub.f32 %v826, %v1409
    %v1411 = vand.u32 %v1410, 4294901760
    %1412 = vmatpush1.msra.mxu0 %v1411
    %v1413 = vand.u32 %v859, 4294901760
    %v1414 = vsub.f32 %v859, %v1413
    %v1415 = vand.u32 %v1414, 4294901760
    %1416 = vmatprep.subr.mxu0 %v1415
    %v1417 = vand.u32 %v858, 4294901760
    %v1418 = vsub.f32 %v858, %v1417
    %v1419 = vand.u32 %v1418, 4294901760
    %1420 = vmatpush1.msra.mxu0 %v1419
    %v1421 = vand.u32 %v851, 4294901760
    %v1422 = vsub.f32 %v851, %v1421
    %v1423 = vand.u32 %v1422, 4294901760
    %1424 = vmatprep.subr.mxu0 %v1423
    %v1425 = vand.u32 %v850, 4294901760
    %v1426 = vsub.f32 %v850, %v1425
    %v1427 = vand.u32 %v1426, 4294901760
    %1428 = vmatpush1.msra.mxu0 %v1427
    %v1429 = vand.u32 %v843, 4294901760
    %v1430 = vsub.f32 %v843, %v1429
    %v1431 = vand.u32 %v1430, 4294901760
    %1432 = vmatprep.subr.mxu0 %v1431
    %v1433 = vand.u32 %v842, 4294901760
    %v1434 = vsub.f32 %v842, %v1433
    %v1435 = vand.u32 %v1434, 4294901760
    %1436 = vmatpush1.msra.mxu0 %v1435
    %v1437 = vand.u32 %v835, 4294901760
    %v1438 = vsub.f32 %v835, %v1437
    %v1439 = vand.u32 %v1438, 4294901760
    %1440 = vmatprep.subr.mxu0 %v1439
    %v1441 = vand.u32 %v834, 4294901760
    %v1442 = vsub.f32 %v834, %v1441
    %v1443 = vand.u32 %v1442, 4294901760
    %1444 = vmatpush1.msra.mxu0 %v1443
    %1445 = vmatprep.subr.mxu0 0.0
    %1446 = vmatpush2.msra.mxu0 0.0
    %1447 = vmatprep.subr.mxu0 0.0
    %1448 = vmatpush2.msra.mxu0 0.0
    %1449 = vmatprep.subr.mxu0 0.0
    %1450 = vmatpush2.msra.mxu0 0.0
    %1451 = vmatprep.subr.mxu0 0.0
    %1452 = vmatpush2.msra.mxu0 0.0
    %1453 = vmatprep.subr.mxu0 0.0
    %1454 = vmatpush2.msra.mxu0 0.0
    %1455 = vmatprep.subr.mxu0 0.0
    %1456 = vmatpush2.msra.mxu0 0.0
    %1457 = vmatprep.subr.mxu0 0.0
    %1458 = vmatpush2.msra.mxu0 0.0
    %1459 = vmatprep.subr.mxu0 0.0
    %1460 = vmatpush2.msra.mxu0 0.0
    %1461 = vmatprep.subr.mxu0 0.0
    %1462 = vmatpush2.msra.mxu0 0.0
    %1463 = vmatprep.subr.mxu0 0.0
    %1464 = vmatpush2.msra.mxu0 0.0
    %1465 = vmatprep.subr.mxu0 0.0
    %1466 = vmatpush2.msra.mxu0 0.0
    %1467 = vmatprep.subr.mxu0 0.0
    %1468 = vmatpush2.msra.mxu0 0.0
    %1469 = vmatprep.subr.mxu0 0.0
    %1470 = vmatpush2.msra.mxu0 0.0
    %1471 = vmatprep.subr.mxu0 0.0
    %1472 = vmatpush2.msra.mxu0 0.0
    %1473 = vmatprep.subr.mxu0 0.0
    %1474 = vmatpush2.msra.mxu0 0.0
    %1475 = vmatprep.subr.mxu0 0.0
    %1476 = vmatpush2.msra.mxu0 0.0
    %1477 = vmatprep.mubr.f32.mxu0 0.0
    %v1478 = vand.u32 %v900, 4294901760
    %1479 = vmatmul.mubr.f32.gmra.mxu0 %v1478
    %v1480 = vpop.f32.mrf.mxu0
    %v1481 = vadd.f32 %v1355, %v1480
    %v1482 = vpop.f32.mrf.mxu0
    %v1483 = vadd.f32 %v1357, %v1482
    %1484 = vdwg.mxu0
    %1485 = vmatprep.subr.mxu0 0.0
    %1486 = vmatpush1.msra.mxu0 0.0
    %1487 = vmatprep.subr.mxu0 0.0
    %1488 = vmatpush1.msra.mxu0 0.0
    %1489 = vmatprep.subr.mxu0 0.0
    %1490 = vmatpush1.msra.mxu0 0.0
    %1491 = vmatprep.subr.mxu0 0.0
    %1492 = vmatpush1.msra.mxu0 0.0
    %1493 = vmatprep.subr.mxu0 0.0
    %1494 = vmatpush1.msra.mxu0 0.0
    %1495 = vmatprep.subr.mxu0 0.0
    %1496 = vmatpush1.msra.mxu0 0.0
    %1497 = vmatprep.subr.mxu0 0.0
    %1498 = vmatpush1.msra.mxu0 0.0
    %v1499 = vand.u32 %v891, 4294901760
    %1500 = vmatprep.subr.mxu0 %v1499
    %v1501 = vand.u32 %v890, 4294901760
    %1502 = vmatpush1.msra.mxu0 %v1501
    %v1503 = vand.u32 %v883, 4294901760
    %1504 = vmatprep.subr.mxu0 %v1503
    %v1505 = vand.u32 %v882, 4294901760
    %1506 = vmatpush1.msra.mxu0 %v1505
    %v1507 = vand.u32 %v875, 4294901760
    %1508 = vmatprep.subr.mxu0 %v1507
    %v1509 = vand.u32 %v874, 4294901760
    %1510 = vmatpush1.msra.mxu0 %v1509
    %v1511 = vand.u32 %v867, 4294901760
    %1512 = vmatprep.subr.mxu0 %v1511
    %v1513 = vand.u32 %v866, 4294901760
    %1514 = vmatpush1.msra.mxu0 %v1513
    %v1515 = vand.u32 %v827, 4294901760
    %1516 = vmatprep.subr.mxu0 %v1515
    %v1517 = vand.u32 %v826, 4294901760
    %1518 = vmatpush1.msra.mxu0 %v1517
    %v1519 = vand.u32 %v859, 4294901760
    %1520 = vmatprep.subr.mxu0 %v1519
    %v1521 = vand.u32 %v858, 4294901760
    %1522 = vmatpush1.msra.mxu0 %v1521
    %v1523 = vand.u32 %v851, 4294901760
    %1524 = vmatprep.subr.mxu0 %v1523
    %v1525 = vand.u32 %v850, 4294901760
    %1526 = vmatpush1.msra.mxu0 %v1525
    %v1527 = vand.u32 %v843, 4294901760
    %1528 = vmatprep.subr.mxu0 %v1527
    %v1529 = vand.u32 %v842, 4294901760
    %1530 = vmatpush1.msra.mxu0 %v1529
    %v1531 = vand.u32 %v835, 4294901760
    %1532 = vmatprep.subr.mxu0 %v1531
    %v1533 = vand.u32 %v834, 4294901760
    %1534 = vmatpush1.msra.mxu0 %v1533
    %1535 = vmatprep.subr.mxu0 0.0
    %1536 = vmatpush2.msra.mxu0 0.0
    %1537 = vmatprep.subr.mxu0 0.0
    %1538 = vmatpush2.msra.mxu0 0.0
    %1539 = vmatprep.subr.mxu0 0.0
    %1540 = vmatpush2.msra.mxu0 0.0
    %1541 = vmatprep.subr.mxu0 0.0
    %1542 = vmatpush2.msra.mxu0 0.0
    %1543 = vmatprep.subr.mxu0 0.0
    %1544 = vmatpush2.msra.mxu0 0.0
    %1545 = vmatprep.subr.mxu0 0.0
    %1546 = vmatpush2.msra.mxu0 0.0
    %1547 = vmatprep.subr.mxu0 0.0
    %1548 = vmatpush2.msra.mxu0 0.0
    %1549 = vmatprep.subr.mxu0 0.0
    %1550 = vmatpush2.msra.mxu0 0.0
    %1551 = vmatprep.subr.mxu0 0.0
    %1552 = vmatpush2.msra.mxu0 0.0
    %1553 = vmatprep.subr.mxu0 0.0
    %1554 = vmatpush2.msra.mxu0 0.0
    %1555 = vmatprep.subr.mxu0 0.0
    %1556 = vmatpush2.msra.mxu0 0.0
    %1557 = vmatprep.subr.mxu0 0.0
    %1558 = vmatpush2.msra.mxu0 0.0
    %1559 = vmatprep.subr.mxu0 0.0
    %1560 = vmatpush2.msra.mxu0 0.0
    %1561 = vmatprep.subr.mxu0 0.0
    %1562 = vmatpush2.msra.mxu0 0.0
    %1563 = vmatprep.subr.mxu0 0.0
    %1564 = vmatpush2.msra.mxu0 0.0
    %1565 = vmatprep.subr.mxu0 0.0
    %1566 = vmatpush2.msra.mxu0 0.0
    %1567 = vmatprep.mubr.f32.mxu0 0.0
    %v1568 = vand.u32 %v900, 4294901760
    %1569 = vmatmul.mubr.f32.gmra.mxu0 %v1568
    %v1570 = vpop.f32.mrf.mxu0
    %v1571 = vadd.f32 %v1481, %v1570
    %v1572 = vpop.f32.mrf.mxu0
    %v1573 = vadd.f32 %v1483, %v1572
    %1574 = vdwg.mxu0
    %v1575 = vmax.f32 %v1571, 0.0
    %v1576 = vmax.f32 %v1573, 0.0
    %v1577 = vadd.f32 %v1575, %v45
    %v1578 = vadd.f32 %v1576, %v46
    %1579 = vst [vmem:[#allocation7] sm:$0x3f] %v1577
    %1580 = vst [vmem:[#allocation7 + $0x8] sm:$0x3f] %v1578
    // Predicated region
    $region30: #{tpu_custom_call.1} parent=1 // pred_check
      _
    $region31: #{tpu_custom_call.1} parent=1 // pred_check_branch
      %1582 = sbr.rel (0) target = $region33
    $region32: #{tpu_custom_call.1} parent=1 // pred_region
      %s1584 = ssub.s32 256, 256
      %1585 = vsyncadd [#allocation4], %s1584
      %s1587 = sshll.u32 [#allocation7], 4
      %s1588 = int_to_ptr.vmem [resolvable:$true] %s1587
      %1590 = dma.vmem_to_hbm [thread:$0]  %s1588, 256, %s5, [#allocation4]
    $region33: #{tpu_custom_call.1} parent=1 // pred_fallthru
      _
    // Predicated region
    $region34: #{tpu_custom_call.1} parent=1 // pred_check
      _
    $region35: #{tpu_custom_call.1} parent=1 // pred_check_branch
      %1592 = sbr.rel (0) target = $region37
    $region36: #{tpu_custom_call.1} parent=1 // pred_region
      %1593 = dma.done [#allocation4], 256
    $region37: #{tpu_custom_call.1} parent=1 // pred_fallthru
      _
    %1594 = vsyncpa [#allocation3], 1
    %1595 = vsyncpa [#allocation6], 1
    %1596 = vsyncpa [#allocation4], 1

</llo_original>
